<compile_context>
chip_gen: v5e
topology: v5e:2x2
jax: 0.10.0
libtpu: 0.0.40
codegen_flags: <defaults>
</compile_context>

<pallas_src>
import functools

import jax
import jax.numpy as jnp
from jax import lax
from jax.experimental import pallas as pl
from jax.experimental.pallas import tpu as pltpu


_VMEM_LIMIT = 32 * 1024 * 1024   # conservative: fits v7x (64 MiB) and v5e/v6e (128 MiB)


def _silu(y):
    # exp goes to the EUP; reciprocal kept exact so the f32 reference check stays
    # tight (switch to approx=True when accuracy budget allows).
    return y * pl.reciprocal(1.0 + jnp.exp(-y))


# ----------------------------------------------------------------------------
# Pallas kernels
# ----------------------------------------------------------------------------
def _dual_pw_kernel(x_ref, w_ref, s_ref, b_ref, o1_ref, o2_ref, *, h):
    """Fused conv1 || conv2 (1x1 convs as one matmul) + folded BN + SiLU.

    x_ref: (TM, Cin)   w_ref: (Cin, 2h)   s_ref/b_ref: (1, 2h)
    o1_ref/o2_ref: (TM, h)
    """
    acc = jnp.dot(x_ref[...], w_ref[...], preferred_element_type=jnp.float32)
    y = _silu(acc * s_ref[...] + b_ref[...])
    o1_ref[...] = y[:, :h].astype(o1_ref.dtype)
    o2_ref[...] = y[:, h:].astype(o2_ref.dtype)


def _concat_pw_kernel(a_ref, b_ref, wa_ref, wb_ref, s_ref, bias_ref, o_ref):
    """Fused channel-concat + conv3 (1x1) + folded BN + SiLU.

    a_ref/b_ref: (TM, h)   wa_ref/wb_ref: (h, Cout)   s/bias: (1, Cout)
    o_ref: (TM, Cout).   acc = [a, b] @ W3 == a @ W3a + b @ W3b.
    """
    acc = jnp.dot(a_ref[...], wa_ref[...], preferred_element_type=jnp.float32)
    acc = acc + jnp.dot(b_ref[...], wb_ref[...], preferred_element_type=jnp.float32)
    y = _silu(acc * s_ref[...] + bias_ref[...])
    o_ref[...] = y.astype(o_ref.dtype)


def _bottleneck_kernel(x_ref, w1_ref, s1_ref, b1_ref, w2_ref, s2_ref, b2_ref,
                       o_ref, pad_ref, acc_ref, *, H, W, hidden, shortcut):
    """Fused Bottleneck: 1x1+BN+SiLU -> 3x3(pad=1)+BN+SiLU -> (+residual).

    x_ref: (1, H, W, hidden)        w1_ref: (hidden, hidden)
    w2_ref: (9*hidden, hidden)      s*/b*: (1, hidden)
    o_ref: (1, H, W, hidden)
    pad_ref: VMEM (H+2, W+2, hidden) f32   acc_ref: VMEM (H*W, hidden) f32
    """
    x = x_ref[...].reshape(H * W, hidden)

    # 1x1 conv + BN + SiLU (result stays on-chip).
    t = _silu(jnp.dot(x, w1_ref[...], preferred_element_type=jnp.float32)
              * s1_ref[...] + b1_ref[...])

    # Stage the zero-padded intermediate once into VMEM scratch.
    pad_ref[...] = jnp.zeros_like(pad_ref)
    pad_ref[1:H + 1, 1:W + 1, :] = t.reshape(H, W, hidden)
    padded = pad_ref[...]

    # im2col: collapse the 9 taps into the contraction dim -> one matmul with
    # K = 9*hidden instead of 9 matmuls with K = hidden.
    cols = [padded[dy:dy + H, dx:dx + W, :] for dy in range(3) for dx in range(3)]
    slab = jnp.concatenate(cols, axis=-1).reshape(H * W, 9 * hidden)
    acc_ref[...] = jnp.dot(slab, w2_ref[...], preferred_element_type=jnp.float32)

    y = _silu(acc_ref[...] * s2_ref[...] + b2_ref[...])
    if shortcut:                              # in_ch == out_ch inside CSP bottleneck
        y = y + x.astype(jnp.float32)
    o_ref[...] = y.reshape(1, H, W, hidden).astype(o_ref.dtype)


# ----------------------------------------------------------------------------
# Wrappers around pallas_call
# ----------------------------------------------------------------------------
def _pick_tm(M, target=512):
    tm = min(target, M)
    tm = max(8, (tm // 8) * 8)
    return tm


def _pad_rows(xm, tm):
    M = xm.shape[0]
    Mp = ((M + tm - 1) // tm) * tm
    if Mp != M:
        xm = jnp.pad(xm, ((0, Mp - M), (0, 0)))
    return xm, Mp


def dual_pw_conv_bn_silu(x_nhwc, w1_oi, bn1, w2_oi, bn2, *, tm_target=512):
    """Fused conv1/conv2: x (N,H,W,Cin), w*_oi (h,Cin).  Returns (x1, x2)."""
    N, H, W, Cin = x_nhwc.shape
    h = w1_oi.shape[0]
    M = N * H * W
    xm = x_nhwc.reshape(M, Cin)
    tm = _pick_tm(M, tm_target)
    xm, Mp = _pad_rows(xm, tm)
    w = jnp.concatenate([jnp.transpose(w1_oi), jnp.transpose(w2_oi)], axis=1)  # (Cin, 2h)
    s = jnp.concatenate([bn1[0], bn2[0]]).reshape(1, 2 * h)
    b = jnp.concatenate([bn1[1], bn2[1]]).reshape(1, 2 * h)
    kern = functools.partial(_dual_pw_kernel, h=h)
    o1, o2 = pl.pallas_call(
        kern,
        out_shape=(jax.ShapeDtypeStruct((Mp, h), x_nhwc.dtype),
                   jax.ShapeDtypeStruct((Mp, h), x_nhwc.dtype)),
        grid=(Mp // tm,),
        in_specs=[
            pl.BlockSpec((tm, Cin), lambda i: (i, 0)),
            pl.BlockSpec((Cin, 2 * h), lambda i: (0, 0)),
            pl.BlockSpec((1, 2 * h), lambda i: (0, 0)),
            pl.BlockSpec((1, 2 * h), lambda i: (0, 0)),
        ],
        out_specs=(pl.BlockSpec((tm, h), lambda i: (i, 0)),
                   pl.BlockSpec((tm, h), lambda i: (i, 0))),
        compiler_params=pltpu.CompilerParams(
            dimension_semantics=("parallel",), vmem_limit_bytes=_VMEM_LIMIT),
    )(xm, w, s, b)
    return (o1[:M].reshape(N, H, W, h), o2[:M].reshape(N, H, W, h))


def bottleneck_fused(x1_nhwc, w1_oi, bn1, w2_oihw, bn2, shortcut=True):
    """Fused Bottleneck.  x1 (N,H,W,h), w1_oi (h,h), w2_oihw (h,h,3,3)."""
    N, H, W, hidden = x1_nhwc.shape
    w1 = jnp.transpose(w1_oi)                                       # (h, h)
    # (Cout,Cin,kh,kw) -> (kh,kw,Cin,Cout) -> (9*Cin, Cout); row = (kh*3+kw)*Cin+cin
    w2 = jnp.transpose(w2_oihw, (2, 3, 1, 0)).reshape(9 * hidden, hidden)
    s1, b1 = bn1
    s2, b2 = bn2
    kern = functools.partial(_bottleneck_kernel, H=H, W=W, hidden=hidden,
                             shortcut=shortcut)
    return pl.pallas_call(
        kern,
        out_shape=jax.ShapeDtypeStruct((N, H, W, hidden), x1_nhwc.dtype),
        grid=(N,),
        in_specs=[
            pl.BlockSpec((1, H, W, hidden), lambda b: (b, 0, 0, 0)),
            pl.BlockSpec((hidden, hidden), lambda b: (0, 0)),
            pl.BlockSpec((1, hidden), lambda b: (0, 0)),
            pl.BlockSpec((1, hidden), lambda b: (0, 0)),
            pl.BlockSpec((9 * hidden, hidden), lambda b: (0, 0)),
            pl.BlockSpec((1, hidden), lambda b: (0, 0)),
            pl.BlockSpec((1, hidden), lambda b: (0, 0)),
        ],
        out_specs=pl.BlockSpec((1, H, W, hidden), lambda b: (b, 0, 0, 0)),
        scratch_shapes=[pltpu.VMEM((H + 2, W + 2, hidden), jnp.float32),
                        pltpu.VMEM((H * W, hidden), jnp.float32)],
        compiler_params=pltpu.CompilerParams(
            dimension_semantics=("parallel",), vmem_limit_bytes=_VMEM_LIMIT),
    )(x1_nhwc, w1, s1.reshape(1, hidden), b1.reshape(1, hidden),
      w2, s2.reshape(1, hidden), b2.reshape(1, hidden))


def concat_pw_conv_bn_silu(a_nhwc, b_nhwc, w_oi, bn, *, tm_target=512):
    """Fused concat([a,b], C) + 1x1 conv + BN + SiLU.  w_oi: (Cout, 2h)."""
    N, H, W, h = a_nhwc.shape
    Cout = w_oi.shape[0]
    M = N * H * W
    tm = _pick_tm(M, tm_target)
    am, Mp = _pad_rows(a_nhwc.reshape(M, h), tm)
    bm, _ = _pad_rows(b_nhwc.reshape(M, h), tm)
    wa = jnp.transpose(w_oi[:, :h])          # (h, Cout) — x1 channels come first
    wb = jnp.transpose(w_oi[:, h:])          # (h, Cout)
    s, bias = bn
    out = pl.pallas_call(
        _concat_pw_kernel,
        out_shape=jax.ShapeDtypeStruct((Mp, Cout), a_nhwc.dtype),
        grid=(Mp // tm,),
        in_specs=[
            pl.BlockSpec((tm, h), lambda i: (i, 0)),
            pl.BlockSpec((tm, h), lambda i: (i, 0)),
            pl.BlockSpec((h, Cout), lambda i: (0, 0)),
            pl.BlockSpec((h, Cout), lambda i: (0, 0)),
            pl.BlockSpec((1, Cout), lambda i: (0, 0)),
            pl.BlockSpec((1, Cout), lambda i: (0, 0)),
        ],
        out_specs=pl.BlockSpec((tm, Cout), lambda i: (i, 0)),
        compiler_params=pltpu.CompilerParams(
            dimension_semantics=("parallel",), vmem_limit_bytes=_VMEM_LIMIT),
    )(am, bm, wa, wb, s.reshape(1, Cout), bias.reshape(1, Cout))
    return out[:M].reshape(N, H, W, Cout)


# ----------------------------------------------------------------------------
# Parameter construction (deterministic, synthetic)
# ----------------------------------------------------------------------------
def _bn_fold(cout, eps=1e-5):
    # Fresh BatchNorm2d (eval): gamma=1, beta=0, mean=0, var=1.
    gamma = jnp.ones((cout,), jnp.float32)
    beta = jnp.zeros((cout,), jnp.float32)
    mean = jnp.zeros((cout,), jnp.float32)
    var = jnp.ones((cout,), jnp.float32)
    scale = gamma / jnp.sqrt(var + eps)
    bias = beta - mean * scale
    return scale, bias


def make_csplayer_params(key, in_channels, out_channels, n=1, expansion=0.5):
    hidden = int(out_channels * expansion)
    keys = jax.random.split(key, 3 + 2 * n)

    def w(k, shape):
        return jax.random.normal(k, shape, jnp.float32) * 0.1

    params = {
        "conv1_w": w(keys[0], (hidden, in_channels)),          # 1x1
        "conv2_w": w(keys[1], (hidden, in_channels)),          # 1x1
        "conv3_w": w(keys[2], (out_channels, 2 * hidden)),     # 1x1
        "conv1_bn": _bn_fold(hidden),
        "conv2_bn": _bn_fold(hidden),
        "conv3_bn": _bn_fold(out_channels),
        "bottlenecks": [],
    }
    for i in range(n):
        bw1 = w(keys[3 + 2 * i], (hidden, hidden))             # 1x1 (expansion 1.0)
        bw2 = w(keys[4 + 2 * i], (hidden, hidden, 3, 3))       # 3x3
        params["bottlenecks"].append({
            "c1_w": bw1, "c1_bn": _bn_fold(hidden),
            "c2_w": bw2, "c2_bn": _bn_fold(hidden),
        })
    return params


# ----------------------------------------------------------------------------
# CSPLayer forward (Pallas) and pure-JAX reference
# ----------------------------------------------------------------------------
def csp_layer_forward(x_nchw, params, shortcut=True):
    x = jnp.transpose(x_nchw, (0, 2, 3, 1))                    # NCHW -> NHWC (glue)
    x1, x2 = dual_pw_conv_bn_silu(x, params["conv1_w"], params["conv1_bn"],
                                  params["conv2_w"], params["conv2_bn"])
    for bp in params["bottlenecks"]:
        x1 = bottleneck_fused(x1, bp["c1_w"], bp["c1_bn"], bp["c2_w"], bp["c2_bn"],
                              shortcut=shortcut)
    out = concat_pw_conv_bn_silu(x1, x2, params["conv3_w"], params["conv3_bn"])
    return jnp.transpose(out, (0, 3, 1, 2))                    # back to NCHW


def _ref_pw(x, w_oi, scale, bias):
    y = jnp.einsum("nhwc,oc->nhwo", x, w_oi)
    y = y * scale + bias
    return jax.nn.silu(y)


def _ref_conv3(x, w_oihw, scale, bias):
    w_hwio = jnp.transpose(w_oihw, (2, 3, 1, 0))
    y = lax.conv_general_dilated(
        x, w_hwio, window_strides=(1, 1), padding=((1, 1), (1, 1)),
        dimension_numbers=("NHWC", "HWIO", "NHWC"))
    y = y * scale + bias
    return jax.nn.silu(y)


def csp_layer_reference(x_nchw, params, shortcut=True):
    x = jnp.transpose(x_nchw, (0, 2, 3, 1))
    x1 = _ref_pw(x, params["conv1_w"], *params["conv1_bn"])
    x2 = _ref_pw(x, params["conv2_w"], *params["conv2_bn"])
    for bp in params["bottlenecks"]:
        y = _ref_pw(x1, bp["c1_w"], *bp["c1_bn"])
        y = _ref_conv3(y, bp["c2_w"], *bp["c2_bn"])
        if shortcut:
            y = y + x1
        x1 = y
    xc = jnp.concatenate([x1, x2], axis=-1)
    out = _ref_pw(xc, params["conv3_w"], *params["conv3_bn"])
    return jnp.transpose(out, (0, 3, 1, 2))


# ----------------------------------------------------------------------------
if __name__ == "__main__":
    key = jax.random.PRNGKey(0)
    kx, kp = jax.random.split(key)

    # CSPLayer(in_channels=4, out_channels=8, n=1, shortcut=True, expansion=0.5)
    in_channels, out_channels, n = 4, 8, 1
    x = jax.random.normal(kx, (2, in_channels, 16, 16), jnp.float32)  # NCHW like PyTorch

    params = make_csplayer_params(kp, in_channels, out_channels, n=n, expansion=0.5)

    out = jax.block_until_ready(csp_layer_forward(x, params, shortcut=True))
    ref = jax.block_until_ready(csp_layer_reference(x, params, shortcut=True))

    assert out.shape == (2, out_channels, 16, 16), out.shape
    err = float(jnp.max(jnp.abs(out - ref)))
    assert jnp.allclose(out, ref, rtol=1e-4, atol=1e-4), err

    print("KERNEL_OK")
</pallas_src>

<mosaic_0001>
module attributes {stable_mosaic.version = 11 : i64} {
  func.func @_dual_pw_kernel(%arg0: i32, %arg1: memref<512x4xf32, #tpu.memory_space<vmem>>, %arg2: memref<4x8xf32, #tpu.memory_space<vmem>>, %arg3: memref<1x8xf32, #tpu.memory_space<vmem>>, %arg4: memref<1x8xf32, #tpu.memory_space<vmem>>, %arg5: memref<512x4xf32, #tpu.memory_space<vmem>>, %arg6: memref<512x4xf32, #tpu.memory_space<vmem>>) attributes {dimension_semantics = [#tpu.dimension_semantics<parallel>], iteration_bounds = array<i64: 1>, scalar_prefetch = 0 : i64, scratch_operands = 0 : i64, tpu.core_type = #tpu.core_type<tc>, window_params = [{transform_indices = @transform_0, window_bounds = array<i64: 512, 4>}, {pipeline_mode = #tpu.pipeline_mode<synchronous>, transform_indices = @transform_1, window_bounds = array<i64: 4, 8>}, {pipeline_mode = #tpu.pipeline_mode<synchronous>, transform_indices = @transform_2, window_bounds = array<i64: 1, 8>}, {pipeline_mode = #tpu.pipeline_mode<synchronous>, transform_indices = @transform_3, window_bounds = array<i64: 1, 8>}, {transform_indices = @transform_4, window_bounds = array<i64: 512, 4>}, {transform_indices = @transform_5, window_bounds = array<i64: 512, 4>}]} {
    %c0 = arith.constant 0 : index
    %c0_0 = arith.constant 0 : index
    %0 = vector.load %arg1[%c0, %c0_0] : memref<512x4xf32, #tpu.memory_space<vmem>>, vector<512x4xf32>
    %c0_1 = arith.constant 0 : index
    %c0_2 = arith.constant 0 : index
    %1 = vector.load %arg2[%c0_1, %c0_2] : memref<4x8xf32, #tpu.memory_space<vmem>>, vector<4x8xf32>
    %cst = arith.constant dense<0.000000e+00> : vector<512x8xf32>
    %2 = tpu.matmul %0, %1, %cst {dimension_numbers = #tpu.dot_dimension_numbers<[1], [0], [0], [1], [0, 0, 1, 1], [], []>} : vector<512x4xf32>, vector<4x8xf32>, vector<512x8xf32> -> vector<512x8xf32>
    %c0_3 = arith.constant 0 : index
    %c0_4 = arith.constant 0 : index
    %3 = vector.load %arg3[%c0_3, %c0_4] : memref<1x8xf32, #tpu.memory_space<vmem>>, vector<1x8xf32>
    %4 = vector.broadcast %3 : vector<1x8xf32> to vector<512x8xf32>
    %5 = arith.mulf %2, %4 : vector<512x8xf32>
    %c0_5 = arith.constant 0 : index
    %c0_6 = arith.constant 0 : index
    %6 = vector.load %arg4[%c0_5, %c0_6] : memref<1x8xf32, #tpu.memory_space<vmem>>, vector<1x8xf32>
    %7 = vector.broadcast %6 : vector<1x8xf32> to vector<512x8xf32>
    %8 = arith.addf %5, %7 : vector<512x8xf32>
    %cst_7 = arith.constant 0.000000e+00 : f32
    %9 = vector.broadcast %cst_7 : f32 to vector<512x8xf32>
    %10 = arith.subf %9, %8 : vector<512x8xf32>
    %11 = math.exp %10 : vector<512x8xf32>
    %cst_8 = arith.constant 1.000000e+00 : f32
    %12 = vector.broadcast %cst_8 : f32 to vector<512x8xf32>
    %13 = arith.addf %12, %11 : vector<512x8xf32>
    %14 = tpu.reciprocal %13 : vector<512x8xf32> -> vector<512x8xf32>
    %15 = arith.mulf %8, %14 : vector<512x8xf32>
    %16 = vector.extract_strided_slice %15 {offsets = [0, 0], sizes = [512, 4], strides = [1, 1]} : vector<512x8xf32> to vector<512x4xf32>
    %c0_9 = arith.constant 0 : index
    %c0_10 = arith.constant 0 : index
    %17 = vector.load %arg5[%c0_9, %c0_10] : memref<512x4xf32, #tpu.memory_space<vmem>>, vector<512x4xf32>
    tpu.vector_store %arg5[%c0_9, %c0_10], %16 {strides = array<i32>} : memref<512x4xf32, #tpu.memory_space<vmem>>, vector<512x4xf32>,
    %18 = vector.extract_strided_slice %15 {offsets = [0, 4], sizes = [512, 4], strides = [1, 1]} : vector<512x8xf32> to vector<512x4xf32>
    %c0_11 = arith.constant 0 : index
    %c0_12 = arith.constant 0 : index
    %19 = vector.load %arg6[%c0_11, %c0_12] : memref<512x4xf32, #tpu.memory_space<vmem>>, vector<512x4xf32>
    tpu.vector_store %arg6[%c0_11, %c0_12], %18 {strides = array<i32>} : memref<512x4xf32, #tpu.memory_space<vmem>>, vector<512x4xf32>,
    return
  }
  func.func @transform_0(%arg0: i32) -> (i32, i32) {
    %c0_i32 = arith.constant 0 : i32
    %c0_i32_0 = arith.constant 0 : i32
    return %arg0, %c0_i32 : i32, i32
  }
  func.func @transform_1(%arg0: i32) -> (i32, i32) {
    %c0_i32 = arith.constant 0 : i32
    %c0_i32_0 = arith.constant 0 : i32
    %c0_i32_1 = arith.constant 0 : i32
    return %c0_i32, %c0_i32_0 : i32, i32
  }
  func.func @transform_2(%arg0: i32) -> (i32, i32) {
    %c0_i32 = arith.constant 0 : i32
    %c0_i32_0 = arith.constant 0 : i32
    %c0_i32_1 = arith.constant 0 : i32
    return %c0_i32, %c0_i32_0 : i32, i32
  }
  func.func @transform_3(%arg0: i32) -> (i32, i32) {
    %c0_i32 = arith.constant 0 : i32
    %c0_i32_0 = arith.constant 0 : i32
    %c0_i32_1 = arith.constant 0 : i32
    return %c0_i32, %c0_i32_0 : i32, i32
  }
  func.func @transform_4(%arg0: i32) -> (i32, i32) {
    %c0_i32 = arith.constant 0 : i32
    %c0_i32_0 = arith.constant 0 : i32
    return %arg0, %c0_i32 : i32, i32
  }
  func.func @transform_5(%arg0: i32) -> (i32, i32) {
    %c0_i32 = arith.constant 0 : i32
    %c0_i32_0 = arith.constant 0 : i32
    return %arg0, %c0_i32 : i32, i32
  }
}

</mosaic_0001>

<llo_original>
// kernel: tpu_custom_call.1
$region0: #{tpu_custom_call.1}
  #allocation0 [shape = 'u32[]', space=smem, size = 0x4, offset = 0x4, fixed_abs, tag = 'smem constant byte address 0x4 - core index']
  #allocation1 [shape = 'u32[72,128]{1,0:T(1,128)}', space=vmem, size = 0x9000, scoped, tag = 'internal scratch']
  %s0 = inlined_call_operand.vmem [shape: f32[512,4], index: 0, kind: input, shape index: {}]
  %s1 = inlined_call_operand.vmem [shape: f32[4,8], index: 1, kind: input, shape index: {}]
  %s2 = inlined_call_operand.vmem [shape: f32[1,8], index: 2, kind: input, shape index: {}]
  %s3 = inlined_call_operand.vmem [shape: f32[1,8], index: 3, kind: input, shape index: {}]
  %s4 = inlined_call_operand.vmem [shape: f32[512,4], index: 4, kind: output, shape index: {0}]
  %s5 = inlined_call_operand.vmem [shape: f32[512,4], index: 5, kind: output, shape index: {1}]
  %6 = xla_tuple %s4, %s5
  %s7 = sld [smem:[#allocation0]]
  $region34: #{tpu_custom_call.1} parent=0
    _
  %s9 = ssub.s32 1, %s7
  %s10 = scalar_select 0, %s9, %s7
  // Predicated region
  $region2: #{tpu_custom_call.1} parent=0 // pred_check
    _
  $region3: #{tpu_custom_call.1} parent=0 // pred_check_branch
    %12 = sbr.rel (0) target = $region5
  $region4: #{tpu_custom_call.1} parent=0 // pred_region
    _
  $region5: #{tpu_custom_call.1} parent=0 // pred_fallthru
    _
  // Predicated region
  $region6: #{tpu_custom_call.1} parent=0 // pred_check
    _
  $region7: #{tpu_custom_call.1} parent=0 // pred_check_branch
    %14 = sbr.rel (0) target = $region9
  $region8: #{tpu_custom_call.1} parent=0 // pred_region
    _
  $region9: #{tpu_custom_call.1} parent=0 // pred_fallthru
    _
  // Predicated region
  $region10: #{tpu_custom_call.1} parent=0 // pred_check
    _
  $region11: #{tpu_custom_call.1} parent=0 // pred_check_branch
    %16 = sbr.rel (0) target = $region13
  $region12: #{tpu_custom_call.1} parent=0 // pred_region
    _
  $region13: #{tpu_custom_call.1} parent=0 // pred_fallthru
    _
  // Predicated region
  $region14: #{tpu_custom_call.1} parent=0 // pred_check
    _
  $region15: #{tpu_custom_call.1} parent=0 // pred_check_branch
    %18 = sbr.rel (0) target = $region17
  $region16: #{tpu_custom_call.1} parent=0 // pred_region
    _
  $region17: #{tpu_custom_call.1} parent=0 // pred_fallthru
    _
  %v19 = vld [vmem:[%s0] sm:$0xff]
  %v20 = vld [vmem:[%s0 + $0x8] sm:$0xff]
  %v21 = vld [vmem:[%s0 + $0x10] sm:$0xff]
  %v22 = vld [vmem:[%s0 + $0x18] sm:$0xff]
  %v23 = vld [vmem:[%s0 + $0x20] sm:$0xff]
  %v24 = vld [vmem:[%s0 + $0x28] sm:$0xff]
  %v25 = vld [vmem:[%s0 + $0x30] sm:$0xff]
  %v26 = vld [vmem:[%s0 + $0x38] sm:$0xff]
  %v27 = vld [vmem:[%s0 + $0x40] sm:$0xff]
  %v28 = vld [vmem:[%s0 + $0x48] sm:$0xff]
  %v29 = vld [vmem:[%s0 + $0x50] sm:$0xff]
  %v30 = vld [vmem:[%s0 + $0x58] sm:$0xff]
  %v31 = vld [vmem:[%s0 + $0x60] sm:$0xff]
  %v32 = vld [vmem:[%s0 + $0x68] sm:$0xff]
  %v33 = vld [vmem:[%s0 + $0x70] sm:$0xff]
  %v34 = vld [vmem:[%s0 + $0x78] sm:$0xff]
  %v35 = vld [vmem:[%s0 + $0x80] sm:$0xff]
  %v36 = vld [vmem:[%s0 + $0x88] sm:$0xff]
  %v37 = vld [vmem:[%s0 + $0x90] sm:$0xff]
  %v38 = vld [vmem:[%s0 + $0x98] sm:$0xff]
  %v39 = vld [vmem:[%s0 + $0xa0] sm:$0xff]
  %v40 = vld [vmem:[%s0 + $0xa8] sm:$0xff]
  %v41 = vld [vmem:[%s0 + $0xb0] sm:$0xff]
  %v42 = vld [vmem:[%s0 + $0xb8] sm:$0xff]
  %v43 = vld [vmem:[%s0 + $0xc0] sm:$0xff]
  %v44 = vld [vmem:[%s0 + $0xc8] sm:$0xff]
  %v45 = vld [vmem:[%s0 + $0xd0] sm:$0xff]
  %v46 = vld [vmem:[%s0 + $0xd8] sm:$0xff]
  %v47 = vld [vmem:[%s0 + $0xe0] sm:$0xff]
  %v48 = vld [vmem:[%s0 + $0xe8] sm:$0xff]
  %v49 = vld [vmem:[%s0 + $0xf0] sm:$0xff]
  %v50 = vld [vmem:[%s0 + $0xf8] sm:$0xff]
  %v51 = vld [vmem:[%s0 + $0x100] sm:$0xff]
  %v52 = vld [vmem:[%s0 + $0x108] sm:$0xff]
  %v53 = vld [vmem:[%s0 + $0x110] sm:$0xff]
  %v54 = vld [vmem:[%s0 + $0x118] sm:$0xff]
  %v55 = vld [vmem:[%s0 + $0x120] sm:$0xff]
  %v56 = vld [vmem:[%s0 + $0x128] sm:$0xff]
  %v57 = vld [vmem:[%s0 + $0x130] sm:$0xff]
  %v58 = vld [vmem:[%s0 + $0x138] sm:$0xff]
  %v59 = vld [vmem:[%s0 + $0x140] sm:$0xff]
  %v60 = vld [vmem:[%s0 + $0x148] sm:$0xff]
  %v61 = vld [vmem:[%s0 + $0x150] sm:$0xff]
  %v62 = vld [vmem:[%s0 + $0x158] sm:$0xff]
  %v63 = vld [vmem:[%s0 + $0x160] sm:$0xff]
  %v64 = vld [vmem:[%s0 + $0x168] sm:$0xff]
  %v65 = vld [vmem:[%s0 + $0x170] sm:$0xff]
  %v66 = vld [vmem:[%s0 + $0x178] sm:$0xff]
  %v67 = vld [vmem:[%s0 + $0x180] sm:$0xff]
  %v68 = vld [vmem:[%s0 + $0x188] sm:$0xff]
  %v69 = vld [vmem:[%s0 + $0x190] sm:$0xff]
  %v70 = vld [vmem:[%s0 + $0x198] sm:$0xff]
  %v71 = vld [vmem:[%s0 + $0x1a0] sm:$0xff]
  %v72 = vld [vmem:[%s0 + $0x1a8] sm:$0xff]
  %v73 = vld [vmem:[%s0 + $0x1b0] sm:$0xff]
  %v74 = vld [vmem:[%s0 + $0x1b8] sm:$0xff]
  %v75 = vld [vmem:[%s0 + $0x1c0] sm:$0xff]
  %v76 = vld [vmem:[%s0 + $0x1c8] sm:$0xff]
  %v77 = vld [vmem:[%s0 + $0x1d0] sm:$0xff]
  %v78 = vld [vmem:[%s0 + $0x1d8] sm:$0xff]
  %v79 = vld [vmem:[%s0 + $0x1e0] sm:$0xff]
  %v80 = vld [vmem:[%s0 + $0x1e8] sm:$0xff]
  %v81 = vld [vmem:[%s0 + $0x1f0] sm:$0xff]
  %v82 = vld [vmem:[%s0 + $0x1f8] sm:$0xff]
  %v83 = vld [vmem:[%s1] sm:$0xf]
  %vm84 = vcmask 31744
  %v86 = vsel %vm84, %v19, 0
  %v89 = vsel %vm84, %v20, 0
  %v92 = vsel %vm84, %v21, 0
  %v95 = vsel %vm84, %v22, 0
  %v98 = vsel %vm84, %v23, 0
  %v101 = vsel %vm84, %v24, 0
  %v104 = vsel %vm84, %v25, 0
  %v107 = vsel %vm84, %v26, 0
  %v110 = vsel %vm84, %v27, 0
  %v113 = vsel %vm84, %v28, 0
  %v116 = vsel %vm84, %v29, 0
  %v119 = vsel %vm84, %v30, 0
  %v122 = vsel %vm84, %v31, 0
  %v125 = vsel %vm84, %v32, 0
  %v128 = vsel %vm84, %v33, 0
  %v131 = vsel %vm84, %v34, 0
  %v134 = vsel %vm84, %v35, 0
  %v137 = vsel %vm84, %v36, 0
  %v140 = vsel %vm84, %v37, 0
  %v143 = vsel %vm84, %v38, 0
  %v146 = vsel %vm84, %v39, 0
  %v149 = vsel %vm84, %v40, 0
  %v152 = vsel %vm84, %v41, 0
  %v155 = vsel %vm84, %v42, 0
  %v158 = vsel %vm84, %v43, 0
  %v161 = vsel %vm84, %v44, 0
  %v164 = vsel %vm84, %v45, 0
  %v167 = vsel %vm84, %v46, 0
  %v170 = vsel %vm84, %v47, 0
  %v173 = vsel %vm84, %v48, 0
  %v176 = vsel %vm84, %v49, 0
  %v179 = vsel %vm84, %v50, 0
  %v182 = vsel %vm84, %v51, 0
  %v185 = vsel %vm84, %v52, 0
  %v188 = vsel %vm84, %v53, 0
  %v191 = vsel %vm84, %v54, 0
  %v194 = vsel %vm84, %v55, 0
  %v197 = vsel %vm84, %v56, 0
  %v200 = vsel %vm84, %v57, 0
  %v203 = vsel %vm84, %v58, 0
  %v206 = vsel %vm84, %v59, 0
  %v209 = vsel %vm84, %v60, 0
  %v212 = vsel %vm84, %v61, 0
  %v215 = vsel %vm84, %v62, 0
  %v218 = vsel %vm84, %v63, 0
  %v221 = vsel %vm84, %v64, 0
  %v224 = vsel %vm84, %v65, 0
  %v227 = vsel %vm84, %v66, 0
  %v230 = vsel %vm84, %v67, 0
  %v233 = vsel %vm84, %v68, 0
  %v236 = vsel %vm84, %v69, 0
  %v239 = vsel %vm84, %v70, 0
  %v242 = vsel %vm84, %v71, 0
  %v245 = vsel %vm84, %v72, 0
  %v248 = vsel %vm84, %v73, 0
  %v251 = vsel %vm84, %v74, 0
  %v254 = vsel %vm84, %v75, 0
  %v257 = vsel %vm84, %v76, 0
  %v260 = vsel %vm84, %v77, 0
  %v263 = vsel %vm84, %v78, 0
  %v266 = vsel %vm84, %v79, 0
  %v269 = vsel %vm84, %v80, 0
  %v272 = vsel %vm84, %v81, 0
  %v275 = vsel %vm84, %v82, 0
  %vm277 = vcmask 1043456
  %v279 = vsel %vm277, %v83, 0
  %281 = vmatpush.msra.mxu0 0.0
  %282 = vmatpush.msra.mxu0 0.0
  %283 = vmatpush.msra.mxu0 0.0
  %284 = vmatpush.msra.mxu0 0.0
  %285 = vmatpush.msra.mxu0 0.0
  %286 = vmatpush.msra.mxu0 0.0
  %287 = vmatpush.msra.mxu0 0.0
  %288 = vmatpush.msra.mxu0 0.0
  %289 = vmatpush.msra.mxu0 0.0
  %290 = vmatpush.msra.mxu0 0.0
  %291 = vmatpush.msra.mxu0 0.0
  %292 = vmatpush.msra.mxu0 0.0
  %293 = vmatpush.msra.mxu0 0.0
  %294 = vmatpush.msra.mxu0 0.0
  %295 = vmatpush.msra.mxu0 0.0
  %296 = vmatpush.msra.mxu0 %v279
  %297 = vmatmul.f32.gmra.mxu0 %v86
  %v298 = vpop.f32.mrf.mxu0
  %v299 = vadd.f32 0.0, %v298
  %300 = vmatmul.f32.gmra.mxu0 %v89
  %v301 = vpop.f32.mrf.mxu0
  %v302 = vadd.f32 0.0, %v301
  %303 = vmatmul.f32.gmra.mxu0 %v92
  %v304 = vpop.f32.mrf.mxu0
  %v305 = vadd.f32 0.0, %v304
  %306 = vmatmul.f32.gmra.mxu0 %v95
  %v307 = vpop.f32.mrf.mxu0
  %v308 = vadd.f32 0.0, %v307
  %309 = vmatmul.f32.gmra.mxu0 %v98
  %v310 = vpop.f32.mrf.mxu0
  %v311 = vadd.f32 0.0, %v310
  %312 = vmatmul.f32.gmra.mxu0 %v101
  %v313 = vpop.f32.mrf.mxu0
  %v314 = vadd.f32 0.0, %v313
  %315 = vmatmul.f32.gmra.mxu0 %v104
  %v316 = vpop.f32.mrf.mxu0
  %v317 = vadd.f32 0.0, %v316
  %318 = vmatmul.f32.gmra.mxu0 %v107
  %v319 = vpop.f32.mrf.mxu0
  %v320 = vadd.f32 0.0, %v319
  %321 = vmatmul.f32.gmra.mxu0 %v110
  %v322 = vpop.f32.mrf.mxu0
  %v323 = vadd.f32 0.0, %v322
  %324 = vmatmul.f32.gmra.mxu0 %v113
  %v325 = vpop.f32.mrf.mxu0
  %v326 = vadd.f32 0.0, %v325
  %327 = vmatmul.f32.gmra.mxu0 %v116
  %v328 = vpop.f32.mrf.mxu0
  %v329 = vadd.f32 0.0, %v328
  %330 = vmatmul.f32.gmra.mxu0 %v119
  %v331 = vpop.f32.mrf.mxu0
  %v332 = vadd.f32 0.0, %v331
  %333 = vmatmul.f32.gmra.mxu0 %v122
  %v334 = vpop.f32.mrf.mxu0
  %v335 = vadd.f32 0.0, %v334
  %336 = vmatmul.f32.gmra.mxu0 %v125
  %v337 = vpop.f32.mrf.mxu0
  %v338 = vadd.f32 0.0, %v337
  %339 = vmatmul.f32.gmra.mxu0 %v128
  %v340 = vpop.f32.mrf.mxu0
  %v341 = vadd.f32 0.0, %v340
  %342 = vmatmul.f32.gmra.mxu0 %v131
  %v343 = vpop.f32.mrf.mxu0
  %v344 = vadd.f32 0.0, %v343
  %345 = vmatmul.f32.gmra.mxu0 %v134
  %v346 = vpop.f32.mrf.mxu0
  %v347 = vadd.f32 0.0, %v346
  %348 = vmatmul.f32.gmra.mxu0 %v137
  %v349 = vpop.f32.mrf.mxu0
  %v350 = vadd.f32 0.0, %v349
  %351 = vmatmul.f32.gmra.mxu0 %v140
  %v352 = vpop.f32.mrf.mxu0
  %v353 = vadd.f32 0.0, %v352
  %354 = vmatmul.f32.gmra.mxu0 %v143
  %v355 = vpop.f32.mrf.mxu0
  %v356 = vadd.f32 0.0, %v355
  %357 = vmatmul.f32.gmra.mxu0 %v146
  %v358 = vpop.f32.mrf.mxu0
  %v359 = vadd.f32 0.0, %v358
  %360 = vmatmul.f32.gmra.mxu0 %v149
  %v361 = vpop.f32.mrf.mxu0
  %v362 = vadd.f32 0.0, %v361
  %363 = vmatmul.f32.gmra.mxu0 %v152
  %v364 = vpop.f32.mrf.mxu0
  %v365 = vadd.f32 0.0, %v364
  %366 = vmatmul.f32.gmra.mxu0 %v155
  %v367 = vpop.f32.mrf.mxu0
  %v368 = vadd.f32 0.0, %v367
  %369 = vmatmul.f32.gmra.mxu0 %v158
  %v370 = vpop.f32.mrf.mxu0
  %v371 = vadd.f32 0.0, %v370
  %372 = vmatmul.f32.gmra.mxu0 %v161
  %v373 = vpop.f32.mrf.mxu0
  %v374 = vadd.f32 0.0, %v373
  %375 = vmatmul.f32.gmra.mxu0 %v164
  %v376 = vpop.f32.mrf.mxu0
  %v377 = vadd.f32 0.0, %v376
  %378 = vmatmul.f32.gmra.mxu0 %v167
  %v379 = vpop.f32.mrf.mxu0
  %v380 = vadd.f32 0.0, %v379
  %381 = vmatmul.f32.gmra.mxu0 %v170
  %v382 = vpop.f32.mrf.mxu0
  %v383 = vadd.f32 0.0, %v382
  %384 = vmatmul.f32.gmra.mxu0 %v173
  %v385 = vpop.f32.mrf.mxu0
  %v386 = vadd.f32 0.0, %v385
  %387 = vmatmul.f32.gmra.mxu0 %v176
  %v388 = vpop.f32.mrf.mxu0
  %v389 = vadd.f32 0.0, %v388
  %390 = vmatmul.f32.gmra.mxu0 %v179
  %v391 = vpop.f32.mrf.mxu0
  %v392 = vadd.f32 0.0, %v391
  %393 = vmatmul.f32.gmra.mxu0 %v182
  %v394 = vpop.f32.mrf.mxu0
  %v395 = vadd.f32 0.0, %v394
  %396 = vmatmul.f32.gmra.mxu0 %v185
  %v397 = vpop.f32.mrf.mxu0
  %v398 = vadd.f32 0.0, %v397
  %399 = vmatmul.f32.gmra.mxu0 %v188
  %v400 = vpop.f32.mrf.mxu0
  %v401 = vadd.f32 0.0, %v400
  %402 = vmatmul.f32.gmra.mxu0 %v191
  %v403 = vpop.f32.mrf.mxu0
  %v404 = vadd.f32 0.0, %v403
  %405 = vmatmul.f32.gmra.mxu0 %v194
  %v406 = vpop.f32.mrf.mxu0
  %v407 = vadd.f32 0.0, %v406
  %408 = vmatmul.f32.gmra.mxu0 %v197
  %v409 = vpop.f32.mrf.mxu0
  %v410 = vadd.f32 0.0, %v409
  %411 = vmatmul.f32.gmra.mxu0 %v200
  %v412 = vpop.f32.mrf.mxu0
  %v413 = vadd.f32 0.0, %v412
  %414 = vmatmul.f32.gmra.mxu0 %v203
  %v415 = vpop.f32.mrf.mxu0
  %v416 = vadd.f32 0.0, %v415
  %417 = vmatmul.f32.gmra.mxu0 %v206
  %v418 = vpop.f32.mrf.mxu0
  %v419 = vadd.f32 0.0, %v418
  %420 = vmatmul.f32.gmra.mxu0 %v209
  %v421 = vpop.f32.mrf.mxu0
  %v422 = vadd.f32 0.0, %v421
  %423 = vmatmul.f32.gmra.mxu0 %v212
  %v424 = vpop.f32.mrf.mxu0
  %v425 = vadd.f32 0.0, %v424
  %426 = vmatmul.f32.gmra.mxu0 %v215
  %v427 = vpop.f32.mrf.mxu0
  %v428 = vadd.f32 0.0, %v427
  %429 = vmatmul.f32.gmra.mxu0 %v218
  %v430 = vpop.f32.mrf.mxu0
  %v431 = vadd.f32 0.0, %v430
  %432 = vmatmul.f32.gmra.mxu0 %v221
  %v433 = vpop.f32.mrf.mxu0
  %v434 = vadd.f32 0.0, %v433
  %435 = vmatmul.f32.gmra.mxu0 %v224
  %v436 = vpop.f32.mrf.mxu0
  %v437 = vadd.f32 0.0, %v436
  %438 = vmatmul.f32.gmra.mxu0 %v227
  %v439 = vpop.f32.mrf.mxu0
  %v440 = vadd.f32 0.0, %v439
  %441 = vmatmul.f32.gmra.mxu0 %v230
  %v442 = vpop.f32.mrf.mxu0
  %v443 = vadd.f32 0.0, %v442
  %444 = vmatmul.f32.gmra.mxu0 %v233
  %v445 = vpop.f32.mrf.mxu0
  %v446 = vadd.f32 0.0, %v445
  %447 = vmatmul.f32.gmra.mxu0 %v236
  %v448 = vpop.f32.mrf.mxu0
  %v449 = vadd.f32 0.0, %v448
  %450 = vmatmul.f32.gmra.mxu0 %v239
  %v451 = vpop.f32.mrf.mxu0
  %v452 = vadd.f32 0.0, %v451
  %453 = vmatmul.f32.gmra.mxu0 %v242
  %v454 = vpop.f32.mrf.mxu0
  %v455 = vadd.f32 0.0, %v454
  %456 = vmatmul.f32.gmra.mxu0 %v245
  %v457 = vpop.f32.mrf.mxu0
  %v458 = vadd.f32 0.0, %v457
  %459 = vmatmul.f32.gmra.mxu0 %v248
  %v460 = vpop.f32.mrf.mxu0
  %v461 = vadd.f32 0.0, %v460
  %462 = vmatmul.f32.gmra.mxu0 %v251
  %v463 = vpop.f32.mrf.mxu0
  %v464 = vadd.f32 0.0, %v463
  %465 = vmatmul.f32.gmra.mxu0 %v254
  %v466 = vpop.f32.mrf.mxu0
  %v467 = vadd.f32 0.0, %v466
  %468 = vmatmul.f32.gmra.mxu0 %v257
  %v469 = vpop.f32.mrf.mxu0
  %v470 = vadd.f32 0.0, %v469
  %471 = vmatmul.f32.gmra.mxu0 %v260
  %v472 = vpop.f32.mrf.mxu0
  %v473 = vadd.f32 0.0, %v472
  %474 = vmatmul.f32.gmra.mxu0 %v263
  %v475 = vpop.f32.mrf.mxu0
  %v476 = vadd.f32 0.0, %v475
  %477 = vmatmul.f32.gmra.mxu0 %v266
  %v478 = vpop.f32.mrf.mxu0
  %v479 = vadd.f32 0.0, %v478
  %480 = vmatmul.f32.gmra.mxu0 %v269
  %v481 = vpop.f32.mrf.mxu0
  %v482 = vadd.f32 0.0, %v481
  %483 = vmatmul.f32.gmra.mxu0 %v272
  %v484 = vpop.f32.mrf.mxu0
  %v485 = vadd.f32 0.0, %v484
  %486 = vmatmul.f32.gmra.mxu0 %v275
  %v487 = vpop.f32.mrf.mxu0
  %v488 = vadd.f32 0.0, %v487
  %489 = vdwg.mxu0
  %v490 = vld [vmem:[%s2] sm:$0x1]
  %v492 = vperm.slane %v490, 0
  %v494 = vmul.f32 %v299, %v492
  %v495 = vmul.f32 %v302, %v492
  %v496 = vmul.f32 %v305, %v492
  %v497 = vmul.f32 %v308, %v492
  %v498 = vmul.f32 %v311, %v492
  %v499 = vmul.f32 %v314, %v492
  %v500 = vmul.f32 %v317, %v492
  %v501 = vmul.f32 %v320, %v492
  %v502 = vmul.f32 %v323, %v492
  %v503 = vmul.f32 %v326, %v492
  %v504 = vmul.f32 %v329, %v492
  %v505 = vmul.f32 %v332, %v492
  %v506 = vmul.f32 %v335, %v492
  %v507 = vmul.f32 %v338, %v492
  %v508 = vmul.f32 %v341, %v492
  %v509 = vmul.f32 %v344, %v492
  %v510 = vmul.f32 %v347, %v492
  %v511 = vmul.f32 %v350, %v492
  %v512 = vmul.f32 %v353, %v492
  %v513 = vmul.f32 %v356, %v492
  %v514 = vmul.f32 %v359, %v492
  %v515 = vmul.f32 %v362, %v492
  %v516 = vmul.f32 %v365, %v492
  %v517 = vmul.f32 %v368, %v492
  %v518 = vmul.f32 %v371, %v492
  %v519 = vmul.f32 %v374, %v492
  %v520 = vmul.f32 %v377, %v492
  %v521 = vmul.f32 %v380, %v492
  %v522 = vmul.f32 %v383, %v492
  %v523 = vmul.f32 %v386, %v492
  %v524 = vmul.f32 %v389, %v492
  %v525 = vmul.f32 %v392, %v492
  %v526 = vmul.f32 %v395, %v492
  %v527 = vmul.f32 %v398, %v492
  %v528 = vmul.f32 %v401, %v492
  %v529 = vmul.f32 %v404, %v492
  %v530 = vmul.f32 %v407, %v492
  %v531 = vmul.f32 %v410, %v492
  %v532 = vmul.f32 %v413, %v492
  %v533 = vmul.f32 %v416, %v492
  %v534 = vmul.f32 %v419, %v492
  %v535 = vmul.f32 %v422, %v492
  %v536 = vmul.f32 %v425, %v492
  %v537 = vmul.f32 %v428, %v492
  %v538 = vmul.f32 %v431, %v492
  %v539 = vmul.f32 %v434, %v492
  %v540 = vmul.f32 %v437, %v492
  %v541 = vmul.f32 %v440, %v492
  %v542 = vmul.f32 %v443, %v492
  %v543 = vmul.f32 %v446, %v492
  %v544 = vmul.f32 %v449, %v492
  %v545 = vmul.f32 %v452, %v492
  %v546 = vmul.f32 %v455, %v492
  %v547 = vmul.f32 %v458, %v492
  %v548 = vmul.f32 %v461, %v492
  %v549 = vmul.f32 %v464, %v492
  %v550 = vmul.f32 %v467, %v492
  %v551 = vmul.f32 %v470, %v492
  %v552 = vmul.f32 %v473, %v492
  %v553 = vmul.f32 %v476, %v492
  %v554 = vmul.f32 %v479, %v492
  %v555 = vmul.f32 %v482, %v492
  %v556 = vmul.f32 %v485, %v492
  %v557 = vmul.f32 %v488, %v492
  %v558 = vld [vmem:[%s3] sm:$0x1]
  %v560 = vperm.slane %v558, 0
  %v562 = vadd.f32 %v494, %v560
  %v563 = vadd.f32 %v495, %v560
  %v564 = vadd.f32 %v496, %v560
  %v565 = vadd.f32 %v497, %v560
  %v566 = vadd.f32 %v498, %v560
  %v567 = vadd.f32 %v499, %v560
  %v568 = vadd.f32 %v500, %v560
  %v569 = vadd.f32 %v501, %v560
  %v570 = vadd.f32 %v502, %v560
  %v571 = vadd.f32 %v503, %v560
  %v572 = vadd.f32 %v504, %v560
  %v573 = vadd.f32 %v505, %v560
  %v574 = vadd.f32 %v506, %v560
  %v575 = vadd.f32 %v507, %v560
  %v576 = vadd.f32 %v508, %v560
  %v577 = vadd.f32 %v509, %v560
  %v578 = vadd.f32 %v510, %v560
  %v579 = vadd.f32 %v511, %v560
  %v580 = vadd.f32 %v512, %v560
  %v581 = vadd.f32 %v513, %v560
  %v582 = vadd.f32 %v514, %v560
  %v583 = vadd.f32 %v515, %v560
  %v584 = vadd.f32 %v516, %v560
  %v585 = vadd.f32 %v517, %v560
  %v586 = vadd.f32 %v518, %v560
  %v587 = vadd.f32 %v519, %v560
  %v588 = vadd.f32 %v520, %v560
  %v589 = vadd.f32 %v521, %v560
  %v590 = vadd.f32 %v522, %v560
  %v591 = vadd.f32 %v523, %v560
  %v592 = vadd.f32 %v524, %v560
  %v593 = vadd.f32 %v525, %v560
  %v594 = vadd.f32 %v526, %v560
  %v595 = vadd.f32 %v527, %v560
  %v596 = vadd.f32 %v528, %v560
  %v597 = vadd.f32 %v529, %v560
  %v598 = vadd.f32 %v530, %v560
  %v599 = vadd.f32 %v531, %v560
  %v600 = vadd.f32 %v532, %v560
  %v601 = vadd.f32 %v533, %v560
  %v602 = vadd.f32 %v534, %v560
  %v603 = vadd.f32 %v535, %v560
  %v604 = vadd.f32 %v536, %v560
  %v605 = vadd.f32 %v537, %v560
  %v606 = vadd.f32 %v538, %v560
  %v607 = vadd.f32 %v539, %v560
  %v608 = vadd.f32 %v540, %v560
  %v609 = vadd.f32 %v541, %v560
  %v610 = vadd.f32 %v542, %v560
  %v611 = vadd.f32 %v543, %v560
  %v612 = vadd.f32 %v544, %v560
  %v613 = vadd.f32 %v545, %v560
  %v614 = vadd.f32 %v546, %v560
  %v615 = vadd.f32 %v547, %v560
  %v616 = vadd.f32 %v548, %v560
  %v617 = vadd.f32 %v549, %v560
  %v618 = vadd.f32 %v550, %v560
  %v619 = vadd.f32 %v551, %v560
  %v620 = vadd.f32 %v552, %v560
  %v621 = vadd.f32 %v553, %v560
  %v622 = vadd.f32 %v554, %v560
  %v623 = vadd.f32 %v555, %v560
  %v624 = vadd.f32 %v556, %v560
  %v625 = vadd.f32 %v557, %v560
  %v626 = vsub.f32 0.0, %v562
  %v627 = vsub.f32 0.0, %v563
  %v628 = vsub.f32 0.0, %v564
  %v629 = vsub.f32 0.0, %v565
  %v630 = vsub.f32 0.0, %v566
  %v631 = vsub.f32 0.0, %v567
  %v632 = vsub.f32 0.0, %v568
  %v633 = vsub.f32 0.0, %v569
  %v634 = vsub.f32 0.0, %v570
  %v635 = vsub.f32 0.0, %v571
  %v636 = vsub.f32 0.0, %v572
  %v637 = vsub.f32 0.0, %v573
  %v638 = vsub.f32 0.0, %v574
  %v639 = vsub.f32 0.0, %v575
  %v640 = vsub.f32 0.0, %v576
  %v641 = vsub.f32 0.0, %v577
  %v642 = vsub.f32 0.0, %v578
  %v643 = vsub.f32 0.0, %v579
  %v644 = vsub.f32 0.0, %v580
  %v645 = vsub.f32 0.0, %v581
  %v646 = vsub.f32 0.0, %v582
  %v647 = vsub.f32 0.0, %v583
  %v648 = vsub.f32 0.0, %v584
  %v649 = vsub.f32 0.0, %v585
  %v650 = vsub.f32 0.0, %v586
  %v651 = vsub.f32 0.0, %v587
  %v652 = vsub.f32 0.0, %v588
  %v653 = vsub.f32 0.0, %v589
  %v654 = vsub.f32 0.0, %v590
  %v655 = vsub.f32 0.0, %v591
  %v656 = vsub.f32 0.0, %v592
  %v657 = vsub.f32 0.0, %v593
  %v658 = vsub.f32 0.0, %v594
  %v659 = vsub.f32 0.0, %v595
  %v660 = vsub.f32 0.0, %v596
  %v661 = vsub.f32 0.0, %v597
  %v662 = vsub.f32 0.0, %v598
  %v663 = vsub.f32 0.0, %v599
  %v664 = vsub.f32 0.0, %v600
  %v665 = vsub.f32 0.0, %v601
  %v666 = vsub.f32 0.0, %v602
  %v667 = vsub.f32 0.0, %v603
  %v668 = vsub.f32 0.0, %v604
  %v669 = vsub.f32 0.0, %v605
  %v670 = vsub.f32 0.0, %v606
  %v671 = vsub.f32 0.0, %v607
  %v672 = vsub.f32 0.0, %v608
  %v673 = vsub.f32 0.0, %v609
  %v674 = vsub.f32 0.0, %v610
  %v675 = vsub.f32 0.0, %v611
  %v676 = vsub.f32 0.0, %v612
  %v677 = vsub.f32 0.0, %v613
  %v678 = vsub.f32 0.0, %v614
  %v679 = vsub.f32 0.0, %v615
  %v680 = vsub.f32 0.0, %v616
  %v681 = vsub.f32 0.0, %v617
  %v682 = vsub.f32 0.0, %v618
  %v683 = vsub.f32 0.0, %v619
  %v684 = vsub.f32 0.0, %v620
  %v685 = vsub.f32 0.0, %v621
  %v686 = vsub.f32 0.0, %v622
  %v687 = vsub.f32 0.0, %v623
  %v688 = vsub.f32 0.0, %v624
  %v689 = vsub.f32 0.0, %v625
  %v690 = vmul.f32 %v626, 1.442695
  %v691 = vpow.pop %v690
  %v692 = vmul.f32 %v627, 1.442695
  %v693 = vpow.pop %v692
  %v694 = vmul.f32 %v628, 1.442695
  %v695 = vpow.pop %v694
  %v696 = vmul.f32 %v629, 1.442695
  %v697 = vpow.pop %v696
  %v698 = vmul.f32 %v630, 1.442695
  %v699 = vpow.pop %v698
  %v700 = vmul.f32 %v631, 1.442695
  %v701 = vpow.pop %v700
  %v702 = vmul.f32 %v632, 1.442695
  %v703 = vpow.pop %v702
  %v704 = vmul.f32 %v633, 1.442695
  %v705 = vpow.pop %v704
  %v706 = vmul.f32 %v634, 1.442695
  %v707 = vpow.pop %v706
  %v708 = vmul.f32 %v635, 1.442695
  %v709 = vpow.pop %v708
  %v710 = vmul.f32 %v636, 1.442695
  %v711 = vpow.pop %v710
  %v712 = vmul.f32 %v637, 1.442695
  %v713 = vpow.pop %v712
  %v714 = vmul.f32 %v638, 1.442695
  %v715 = vpow.pop %v714
  %v716 = vmul.f32 %v639, 1.442695
  %v717 = vpow.pop %v716
  %v718 = vmul.f32 %v640, 1.442695
  %v719 = vpow.pop %v718
  %v720 = vmul.f32 %v641, 1.442695
  %v721 = vpow.pop %v720
  %v722 = vmul.f32 %v642, 1.442695
  %v723 = vpow.pop %v722
  %v724 = vmul.f32 %v643, 1.442695
  %v725 = vpow.pop %v724
  %v726 = vmul.f32 %v644, 1.442695
  %v727 = vpow.pop %v726
  %v728 = vmul.f32 %v645, 1.442695
  %v729 = vpow.pop %v728
  %v730 = vmul.f32 %v646, 1.442695
  %v731 = vpow.pop %v730
  %v732 = vmul.f32 %v647, 1.442695
  %v733 = vpow.pop %v732
  %v734 = vmul.f32 %v648, 1.442695
  %v735 = vpow.pop %v734
  %v736 = vmul.f32 %v649, 1.442695
  %v737 = vpow.pop %v736
  %v738 = vmul.f32 %v650, 1.442695
  %v739 = vpow.pop %v738
  %v740 = vmul.f32 %v651, 1.442695
  %v741 = vpow.pop %v740
  %v742 = vmul.f32 %v652, 1.442695
  %v743 = vpow.pop %v742
  %v744 = vmul.f32 %v653, 1.442695
  %v745 = vpow.pop %v744
  %v746 = vmul.f32 %v654, 1.442695
  %v747 = vpow.pop %v746
  %v748 = vmul.f32 %v655, 1.442695
  %v749 = vpow.pop %v748
  %v750 = vmul.f32 %v656, 1.442695
  %v751 = vpow.pop %v750
  %v752 = vmul.f32 %v657, 1.442695
  %v753 = vpow.pop %v752
  %v754 = vmul.f32 %v658, 1.442695
  %v755 = vpow.pop %v754
  %v756 = vmul.f32 %v659, 1.442695
  %v757 = vpow.pop %v756
  %v758 = vmul.f32 %v660, 1.442695
  %v759 = vpow.pop %v758
  %v760 = vmul.f32 %v661, 1.442695
  %v761 = vpow.pop %v760
  %v762 = vmul.f32 %v662, 1.442695
  %v763 = vpow.pop %v762
  %v764 = vmul.f32 %v663, 1.442695
  %v765 = vpow.pop %v764
  %v766 = vmul.f32 %v664, 1.442695
  %v767 = vpow.pop %v766
  %v768 = vmul.f32 %v665, 1.442695
  %v769 = vpow.pop %v768
  %v770 = vmul.f32 %v666, 1.442695
  %v771 = vpow.pop %v770
  %v772 = vmul.f32 %v667, 1.442695
  %v773 = vpow.pop %v772
  %v774 = vmul.f32 %v668, 1.442695
  %v775 = vpow.pop %v774
  %v776 = vmul.f32 %v669, 1.442695
  %v777 = vpow.pop %v776
  %v778 = vmul.f32 %v670, 1.442695
  %v779 = vpow.pop %v778
  %v780 = vmul.f32 %v671, 1.442695
  %v781 = vpow.pop %v780
  %v782 = vmul.f32 %v672, 1.442695
  %v783 = vpow.pop %v782
  %v784 = vmul.f32 %v673, 1.442695
  %v785 = vpow.pop %v784
  %v786 = vmul.f32 %v674, 1.442695
  %v787 = vpow.pop %v786
  %v788 = vmul.f32 %v675, 1.442695
  %v789 = vpow.pop %v788
  %v790 = vmul.f32 %v676, 1.442695
  %v791 = vpow.pop %v790
  %v792 = vmul.f32 %v677, 1.442695
  %v793 = vpow.pop %v792
  %v794 = vmul.f32 %v678, 1.442695
  %v795 = vpow.pop %v794
  %v796 = vmul.f32 %v679, 1.442695
  %v797 = vpow.pop %v796
  %v798 = vmul.f32 %v680, 1.442695
  %v799 = vpow.pop %v798
  %v800 = vmul.f32 %v681, 1.442695
  %v801 = vpow.pop %v800
  %v802 = vmul.f32 %v682, 1.442695
  %v803 = vpow.pop %v802
  %v804 = vmul.f32 %v683, 1.442695
  %v805 = vpow.pop %v804
  %v806 = vmul.f32 %v684, 1.442695
  %v807 = vpow.pop %v806
  %v808 = vmul.f32 %v685, 1.442695
  %v809 = vpow.pop %v808
  %v810 = vmul.f32 %v686, 1.442695
  %v811 = vpow.pop %v810
  %v812 = vmul.f32 %v687, 1.442695
  %v813 = vpow.pop %v812
  %v814 = vmul.f32 %v688, 1.442695
  %v815 = vpow.pop %v814
  %v816 = vmul.f32 %v689, 1.442695
  %v817 = vpow.pop %v816
  %v818 = vadd.f32 %v691, 1.0
  %v819 = vadd.f32 %v693, 1.0
  %v820 = vadd.f32 %v695, 1.0
  %v821 = vadd.f32 %v697, 1.0
  %v822 = vadd.f32 %v699, 1.0
  %v823 = vadd.f32 %v701, 1.0
  %v824 = vadd.f32 %v703, 1.0
  %v825 = vadd.f32 %v705, 1.0
  %v826 = vadd.f32 %v707, 1.0
  %v827 = vadd.f32 %v709, 1.0
  %v828 = vadd.f32 %v711, 1.0
  %v829 = vadd.f32 %v713, 1.0
  %v830 = vadd.f32 %v715, 1.0
  %v831 = vadd.f32 %v717, 1.0
  %v832 = vadd.f32 %v719, 1.0
  %v833 = vadd.f32 %v721, 1.0
  %v834 = vadd.f32 %v723, 1.0
  %v835 = vadd.f32 %v725, 1.0
  %v836 = vadd.f32 %v727, 1.0
  %v837 = vadd.f32 %v729, 1.0
  %v838 = vadd.f32 %v731, 1.0
  %v839 = vadd.f32 %v733, 1.0
  %v840 = vadd.f32 %v735, 1.0
  %v841 = vadd.f32 %v737, 1.0
  %v842 = vadd.f32 %v739, 1.0
  %v843 = vadd.f32 %v741, 1.0
  %v844 = vadd.f32 %v743, 1.0
  %v845 = vadd.f32 %v745, 1.0
  %v846 = vadd.f32 %v747, 1.0
  %v847 = vadd.f32 %v749, 1.0
  %v848 = vadd.f32 %v751, 1.0
  %v849 = vadd.f32 %v753, 1.0
  %v850 = vadd.f32 %v755, 1.0
  %v851 = vadd.f32 %v757, 1.0
  %v852 = vadd.f32 %v759, 1.0
  %v853 = vadd.f32 %v761, 1.0
  %v854 = vadd.f32 %v763, 1.0
  %v855 = vadd.f32 %v765, 1.0
  %v856 = vadd.f32 %v767, 1.0
  %v857 = vadd.f32 %v769, 1.0
  %v858 = vadd.f32 %v771, 1.0
  %v859 = vadd.f32 %v773, 1.0
  %v860 = vadd.f32 %v775, 1.0
  %v861 = vadd.f32 %v777, 1.0
  %v862 = vadd.f32 %v779, 1.0
  %v863 = vadd.f32 %v781, 1.0
  %v864 = vadd.f32 %v783, 1.0
  %v865 = vadd.f32 %v785, 1.0
  %v866 = vadd.f32 %v787, 1.0
  %v867 = vadd.f32 %v789, 1.0
  %v868 = vadd.f32 %v791, 1.0
  %v869 = vadd.f32 %v793, 1.0
  %v870 = vadd.f32 %v795, 1.0
  %v871 = vadd.f32 %v797, 1.0
  %v872 = vadd.f32 %v799, 1.0
  %v873 = vadd.f32 %v801, 1.0
  %v874 = vadd.f32 %v803, 1.0
  %v875 = vadd.f32 %v805, 1.0
  %v876 = vadd.f32 %v807, 1.0
  %v877 = vadd.f32 %v809, 1.0
  %v878 = vadd.f32 %v811, 1.0
  %v879 = vadd.f32 %v813, 1.0
  %v880 = vadd.f32 %v815, 1.0
  %v881 = vadd.f32 %v817, 1.0
  %v882 = vrcp.pop %v818
  %v883 = vmul.f32 %v818, %v882
  %v884 = vsub.f32 1.0, %v883
  %v885 = vmul.f32 %v882, %v884
  %v886 = vadd.f32 %v882, %v885
  %vm887 = vweird.f32 %v818
  %vm888 = vweird.f32 %v882
  %vm889 = vmor %vm887, %vm888
  %v890 = vsel %vm889, %v882, %v886
  %v891 = vand.u32 2147483647, %v818
  %vm892 = vcmp.eq.f32.partialorder %v891, 8.507059e+37
  %v893 = vand.u32 %v818, 2147483648
  %v894 = vor.u32 1.1754944e-38, %v893
  %v895 = vsel %vm892, %v894, %v890
  %v896 = vrcp.pop %v819
  %v897 = vmul.f32 %v819, %v896
  %v898 = vsub.f32 1.0, %v897
  %v899 = vmul.f32 %v896, %v898
  %v900 = vadd.f32 %v896, %v899
  %vm901 = vweird.f32 %v819
  %vm902 = vweird.f32 %v896
  %vm903 = vmor %vm901, %vm902
  %v904 = vsel %vm903, %v896, %v900
  %v905 = vand.u32 2147483647, %v819
  %vm906 = vcmp.eq.f32.partialorder %v905, 8.507059e+37
  %v907 = vand.u32 %v819, 2147483648
  %v908 = vor.u32 1.1754944e-38, %v907
  %v909 = vsel %vm906, %v908, %v904
  %v910 = vrcp.pop %v820
  %v911 = vmul.f32 %v820, %v910
  %v912 = vsub.f32 1.0, %v911
  %v913 = vmul.f32 %v910, %v912
  %v914 = vadd.f32 %v910, %v913
  %vm915 = vweird.f32 %v820
  %vm916 = vweird.f32 %v910
  %vm917 = vmor %vm915, %vm916
  %v918 = vsel %vm917, %v910, %v914
  %v919 = vand.u32 2147483647, %v820
  %vm920 = vcmp.eq.f32.partialorder %v919, 8.507059e+37
  %v921 = vand.u32 %v820, 2147483648
  %v922 = vor.u32 1.1754944e-38, %v921
  %v923 = vsel %vm920, %v922, %v918
  %v924 = vrcp.pop %v821
  %v925 = vmul.f32 %v821, %v924
  %v926 = vsub.f32 1.0, %v925
  %v927 = vmul.f32 %v924, %v926
  %v928 = vadd.f32 %v924, %v927
  %vm929 = vweird.f32 %v821
  %vm930 = vweird.f32 %v924
  %vm931 = vmor %vm929, %vm930
  %v932 = vsel %vm931, %v924, %v928
  %v933 = vand.u32 2147483647, %v821
  %vm934 = vcmp.eq.f32.partialorder %v933, 8.507059e+37
  %v935 = vand.u32 %v821, 2147483648
  %v936 = vor.u32 1.1754944e-38, %v935
  %v937 = vsel %vm934, %v936, %v932
  %v938 = vrcp.pop %v822
  %v939 = vmul.f32 %v822, %v938
  %v940 = vsub.f32 1.0, %v939
  %v941 = vmul.f32 %v938, %v940
  %v942 = vadd.f32 %v938, %v941
  %vm943 = vweird.f32 %v822
  %vm944 = vweird.f32 %v938
  %vm945 = vmor %vm943, %vm944
  %v946 = vsel %vm945, %v938, %v942
  %v947 = vand.u32 2147483647, %v822
  %vm948 = vcmp.eq.f32.partialorder %v947, 8.507059e+37
  %v949 = vand.u32 %v822, 2147483648
  %v950 = vor.u32 1.1754944e-38, %v949
  %v951 = vsel %vm948, %v950, %v946
  %v952 = vrcp.pop %v823
  %v953 = vmul.f32 %v823, %v952
  %v954 = vsub.f32 1.0, %v953
  %v955 = vmul.f32 %v952, %v954
  %v956 = vadd.f32 %v952, %v955
  %vm957 = vweird.f32 %v823
  %vm958 = vweird.f32 %v952
  %vm959 = vmor %vm957, %vm958
  %v960 = vsel %vm959, %v952, %v956
  %v961 = vand.u32 2147483647, %v823
  %vm962 = vcmp.eq.f32.partialorder %v961, 8.507059e+37
  %v963 = vand.u32 %v823, 2147483648
  %v964 = vor.u32 1.1754944e-38, %v963
  %v965 = vsel %vm962, %v964, %v960
  %v966 = vrcp.pop %v824
  %v967 = vmul.f32 %v824, %v966
  %v968 = vsub.f32 1.0, %v967
  %v969 = vmul.f32 %v966, %v968
  %v970 = vadd.f32 %v966, %v969
  %vm971 = vweird.f32 %v824
  %vm972 = vweird.f32 %v966
  %vm973 = vmor %vm971, %vm972
  %v974 = vsel %vm973, %v966, %v970
  %v975 = vand.u32 2147483647, %v824
  %vm976 = vcmp.eq.f32.partialorder %v975, 8.507059e+37
  %v977 = vand.u32 %v824, 2147483648
  %v978 = vor.u32 1.1754944e-38, %v977
  %v979 = vsel %vm976, %v978, %v974
  %v980 = vrcp.pop %v825
  %v981 = vmul.f32 %v825, %v980
  %v982 = vsub.f32 1.0, %v981
  %v983 = vmul.f32 %v980, %v982
  %v984 = vadd.f32 %v980, %v983
  %vm985 = vweird.f32 %v825
  %vm986 = vweird.f32 %v980
  %vm987 = vmor %vm985, %vm986
  %v988 = vsel %vm987, %v980, %v984
  %v989 = vand.u32 2147483647, %v825
  %vm990 = vcmp.eq.f32.partialorder %v989, 8.507059e+37
  %v991 = vand.u32 %v825, 2147483648
  %v992 = vor.u32 1.1754944e-38, %v991
  %v993 = vsel %vm990, %v992, %v988
  %v994 = vrcp.pop %v826
  %v995 = vmul.f32 %v826, %v994
  %v996 = vsub.f32 1.0, %v995
  %v997 = vmul.f32 %v994, %v996
  %v998 = vadd.f32 %v994, %v997
  %vm999 = vweird.f32 %v826
  %vm1000 = vweird.f32 %v994
  %vm1001 = vmor %vm999, %vm1000
  %v1002 = vsel %vm1001, %v994, %v998
  %v1003 = vand.u32 2147483647, %v826
  %vm1004 = vcmp.eq.f32.partialorder %v1003, 8.507059e+37
  %v1005 = vand.u32 %v826, 2147483648
  %v1006 = vor.u32 1.1754944e-38, %v1005
  %v1007 = vsel %vm1004, %v1006, %v1002
  %v1008 = vrcp.pop %v827
  %v1009 = vmul.f32 %v827, %v1008
  %v1010 = vsub.f32 1.0, %v1009
  %v1011 = vmul.f32 %v1008, %v1010
  %v1012 = vadd.f32 %v1008, %v1011
  %vm1013 = vweird.f32 %v827
  %vm1014 = vweird.f32 %v1008
  %vm1015 = vmor %vm1013, %vm1014
  %v1016 = vsel %vm1015, %v1008, %v1012
  %v1017 = vand.u32 2147483647, %v827
  %vm1018 = vcmp.eq.f32.partialorder %v1017, 8.507059e+37
  %v1019 = vand.u32 %v827, 2147483648
  %v1020 = vor.u32 1.1754944e-38, %v1019
  %v1021 = vsel %vm1018, %v1020, %v1016
  %v1022 = vrcp.pop %v828
  %v1023 = vmul.f32 %v828, %v1022
  %v1024 = vsub.f32 1.0, %v1023
  %v1025 = vmul.f32 %v1022, %v1024
  %v1026 = vadd.f32 %v1022, %v1025
  %vm1027 = vweird.f32 %v828
  %vm1028 = vweird.f32 %v1022
  %vm1029 = vmor %vm1027, %vm1028
  %v1030 = vsel %vm1029, %v1022, %v1026
  %v1031 = vand.u32 2147483647, %v828
  %vm1032 = vcmp.eq.f32.partialorder %v1031, 8.507059e+37
  %v1033 = vand.u32 %v828, 2147483648
  %v1034 = vor.u32 1.1754944e-38, %v1033
  %v1035 = vsel %vm1032, %v1034, %v1030
  %v1036 = vrcp.pop %v829
  %v1037 = vmul.f32 %v829, %v1036
  %v1038 = vsub.f32 1.0, %v1037
  %v1039 = vmul.f32 %v1036, %v1038
  %v1040 = vadd.f32 %v1036, %v1039
  %vm1041 = vweird.f32 %v829
  %vm1042 = vweird.f32 %v1036
  %vm1043 = vmor %vm1041, %vm1042
  %v1044 = vsel %vm1043, %v1036, %v1040
  %v1045 = vand.u32 2147483647, %v829
  %vm1046 = vcmp.eq.f32.partialorder %v1045, 8.507059e+37
  %v1047 = vand.u32 %v829, 2147483648
  %v1048 = vor.u32 1.1754944e-38, %v1047
  %v1049 = vsel %vm1046, %v1048, %v1044
  %v1050 = vrcp.pop %v830
  %v1051 = vmul.f32 %v830, %v1050
  %v1052 = vsub.f32 1.0, %v1051
  %v1053 = vmul.f32 %v1050, %v1052
  %v1054 = vadd.f32 %v1050, %v1053
  %vm1055 = vweird.f32 %v830
  %vm1056 = vweird.f32 %v1050
  %vm1057 = vmor %vm1055, %vm1056
  %v1058 = vsel %vm1057, %v1050, %v1054
  %v1059 = vand.u32 2147483647, %v830
  %vm1060 = vcmp.eq.f32.partialorder %v1059, 8.507059e+37
  %v1061 = vand.u32 %v830, 2147483648
  %v1062 = vor.u32 1.1754944e-38, %v1061
  %v1063 = vsel %vm1060, %v1062, %v1058
  %v1064 = vrcp.pop %v831
  %v1065 = vmul.f32 %v831, %v1064
  %v1066 = vsub.f32 1.0, %v1065
  %v1067 = vmul.f32 %v1064, %v1066
  %v1068 = vadd.f32 %v1064, %v1067
  %vm1069 = vweird.f32 %v831
  %vm1070 = vweird.f32 %v1064
  %vm1071 = vmor %vm1069, %vm1070
  %v1072 = vsel %vm1071, %v1064, %v1068
  %v1073 = vand.u32 2147483647, %v831
  %vm1074 = vcmp.eq.f32.partialorder %v1073, 8.507059e+37
  %v1075 = vand.u32 %v831, 2147483648
  %v1076 = vor.u32 1.1754944e-38, %v1075
  %v1077 = vsel %vm1074, %v1076, %v1072
  %v1078 = vrcp.pop %v832
  %v1079 = vmul.f32 %v832, %v1078
  %v1080 = vsub.f32 1.0, %v1079
  %v1081 = vmul.f32 %v1078, %v1080
  %v1082 = vadd.f32 %v1078, %v1081
  %vm1083 = vweird.f32 %v832
  %vm1084 = vweird.f32 %v1078
  %vm1085 = vmor %vm1083, %vm1084
  %v1086 = vsel %vm1085, %v1078, %v1082
  %v1087 = vand.u32 2147483647, %v832
  %vm1088 = vcmp.eq.f32.partialorder %v1087, 8.507059e+37
  %v1089 = vand.u32 %v832, 2147483648
  %v1090 = vor.u32 1.1754944e-38, %v1089
  %v1091 = vsel %vm1088, %v1090, %v1086
  %v1092 = vrcp.pop %v833
  %v1093 = vmul.f32 %v833, %v1092
  %v1094 = vsub.f32 1.0, %v1093
  %v1095 = vmul.f32 %v1092, %v1094
  %v1096 = vadd.f32 %v1092, %v1095
  %vm1097 = vweird.f32 %v833
  %vm1098 = vweird.f32 %v1092
  %vm1099 = vmor %vm1097, %vm1098
  %v1100 = vsel %vm1099, %v1092, %v1096
  %v1101 = vand.u32 2147483647, %v833
  %vm1102 = vcmp.eq.f32.partialorder %v1101, 8.507059e+37
  %v1103 = vand.u32 %v833, 2147483648
  %v1104 = vor.u32 1.1754944e-38, %v1103
  %v1105 = vsel %vm1102, %v1104, %v1100
  %v1106 = vrcp.pop %v834
  %v1107 = vmul.f32 %v834, %v1106
  %v1108 = vsub.f32 1.0, %v1107
  %v1109 = vmul.f32 %v1106, %v1108
  %v1110 = vadd.f32 %v1106, %v1109
  %vm1111 = vweird.f32 %v834
  %vm1112 = vweird.f32 %v1106
  %vm1113 = vmor %vm1111, %vm1112
  %v1114 = vsel %vm1113, %v1106, %v1110
  %v1115 = vand.u32 2147483647, %v834
  %vm1116 = vcmp.eq.f32.partialorder %v1115, 8.507059e+37
  %v1117 = vand.u32 %v834, 2147483648
  %v1118 = vor.u32 1.1754944e-38, %v1117
  %v1119 = vsel %vm1116, %v1118, %v1114
  %v1120 = vrcp.pop %v835
  %v1121 = vmul.f32 %v835, %v1120
  %v1122 = vsub.f32 1.0, %v1121
  %v1123 = vmul.f32 %v1120, %v1122
  %v1124 = vadd.f32 %v1120, %v1123
  %vm1125 = vweird.f32 %v835
  %vm1126 = vweird.f32 %v1120
  %vm1127 = vmor %vm1125, %vm1126
  %v1128 = vsel %vm1127, %v1120, %v1124
  %v1129 = vand.u32 2147483647, %v835
  %vm1130 = vcmp.eq.f32.partialorder %v1129, 8.507059e+37
  %v1131 = vand.u32 %v835, 2147483648
  %v1132 = vor.u32 1.1754944e-38, %v1131
  %v1133 = vsel %vm1130, %v1132, %v1128
  %v1134 = vrcp.pop %v836
  %v1135 = vmul.f32 %v836, %v1134
  %v1136 = vsub.f32 1.0, %v1135
  %v1137 = vmul.f32 %v1134, %v1136
  %v1138 = vadd.f32 %v1134, %v1137
  %vm1139 = vweird.f32 %v836
  %vm1140 = vweird.f32 %v1134
  %vm1141 = vmor %vm1139, %vm1140
  %v1142 = vsel %vm1141, %v1134, %v1138
  %v1143 = vand.u32 2147483647, %v836
  %vm1144 = vcmp.eq.f32.partialorder %v1143, 8.507059e+37
  %v1145 = vand.u32 %v836, 2147483648
  %v1146 = vor.u32 1.1754944e-38, %v1145
  %v1147 = vsel %vm1144, %v1146, %v1142
  %v1148 = vrcp.pop %v837
  %v1149 = vmul.f32 %v837, %v1148
  %v1150 = vsub.f32 1.0, %v1149
  %v1151 = vmul.f32 %v1148, %v1150
  %v1152 = vadd.f32 %v1148, %v1151
  %vm1153 = vweird.f32 %v837
  %vm1154 = vweird.f32 %v1148
  %vm1155 = vmor %vm1153, %vm1154
  %v1156 = vsel %vm1155, %v1148, %v1152
  %v1157 = vand.u32 2147483647, %v837
  %vm1158 = vcmp.eq.f32.partialorder %v1157, 8.507059e+37
  %v1159 = vand.u32 %v837, 2147483648
  %v1160 = vor.u32 1.1754944e-38, %v1159
  %v1161 = vsel %vm1158, %v1160, %v1156
  %v1162 = vrcp.pop %v838
  %v1163 = vmul.f32 %v838, %v1162
  %v1164 = vsub.f32 1.0, %v1163
  %v1165 = vmul.f32 %v1162, %v1164
  %v1166 = vadd.f32 %v1162, %v1165
  %vm1167 = vweird.f32 %v838
  %vm1168 = vweird.f32 %v1162
  %vm1169 = vmor %vm1167, %vm1168
  %v1170 = vsel %vm1169, %v1162, %v1166
  %v1171 = vand.u32 2147483647, %v838
  %vm1172 = vcmp.eq.f32.partialorder %v1171, 8.507059e+37
  %v1173 = vand.u32 %v838, 2147483648
  %v1174 = vor.u32 1.1754944e-38, %v1173
  %v1175 = vsel %vm1172, %v1174, %v1170
  %v1176 = vrcp.pop %v839
  %v1177 = vmul.f32 %v839, %v1176
  %v1178 = vsub.f32 1.0, %v1177
  %v1179 = vmul.f32 %v1176, %v1178
  %v1180 = vadd.f32 %v1176, %v1179
  %vm1181 = vweird.f32 %v839
  %vm1182 = vweird.f32 %v1176
  %vm1183 = vmor %vm1181, %vm1182
  %v1184 = vsel %vm1183, %v1176, %v1180
  %v1185 = vand.u32 2147483647, %v839
  %vm1186 = vcmp.eq.f32.partialorder %v1185, 8.507059e+37
  %v1187 = vand.u32 %v839, 2147483648
  %v1188 = vor.u32 1.1754944e-38, %v1187
  %v1189 = vsel %vm1186, %v1188, %v1184
  %v1190 = vrcp.pop %v840
  %v1191 = vmul.f32 %v840, %v1190
  %v1192 = vsub.f32 1.0, %v1191
  %v1193 = vmul.f32 %v1190, %v1192
  %v1194 = vadd.f32 %v1190, %v1193
  %vm1195 = vweird.f32 %v840
  %vm1196 = vweird.f32 %v1190
  %vm1197 = vmor %vm1195, %vm1196
  %v1198 = vsel %vm1197, %v1190, %v1194
  %v1199 = vand.u32 2147483647, %v840
  %vm1200 = vcmp.eq.f32.partialorder %v1199, 8.507059e+37
  %v1201 = vand.u32 %v840, 2147483648
  %v1202 = vor.u32 1.1754944e-38, %v1201
  %v1203 = vsel %vm1200, %v1202, %v1198
  %v1204 = vrcp.pop %v841
  %v1205 = vmul.f32 %v841, %v1204
  %v1206 = vsub.f32 1.0, %v1205
  %v1207 = vmul.f32 %v1204, %v1206
  %v1208 = vadd.f32 %v1204, %v1207
  %vm1209 = vweird.f32 %v841
  %vm1210 = vweird.f32 %v1204
  %vm1211 = vmor %vm1209, %vm1210
  %v1212 = vsel %vm1211, %v1204, %v1208
  %v1213 = vand.u32 2147483647, %v841
  %vm1214 = vcmp.eq.f32.partialorder %v1213, 8.507059e+37
  %v1215 = vand.u32 %v841, 2147483648
  %v1216 = vor.u32 1.1754944e-38, %v1215
  %v1217 = vsel %vm1214, %v1216, %v1212
  %v1218 = vrcp.pop %v842
  %v1219 = vmul.f32 %v842, %v1218
  %v1220 = vsub.f32 1.0, %v1219
  %v1221 = vmul.f32 %v1218, %v1220
  %v1222 = vadd.f32 %v1218, %v1221
  %vm1223 = vweird.f32 %v842
  %vm1224 = vweird.f32 %v1218
  %vm1225 = vmor %vm1223, %vm1224
  %v1226 = vsel %vm1225, %v1218, %v1222
  %v1227 = vand.u32 2147483647, %v842
  %vm1228 = vcmp.eq.f32.partialorder %v1227, 8.507059e+37
  %v1229 = vand.u32 %v842, 2147483648
  %v1230 = vor.u32 1.1754944e-38, %v1229
  %v1231 = vsel %vm1228, %v1230, %v1226
  %v1232 = vrcp.pop %v843
  %v1233 = vmul.f32 %v843, %v1232
  %v1234 = vsub.f32 1.0, %v1233
  %v1235 = vmul.f32 %v1232, %v1234
  %v1236 = vadd.f32 %v1232, %v1235
  %vm1237 = vweird.f32 %v843
  %vm1238 = vweird.f32 %v1232
  %vm1239 = vmor %vm1237, %vm1238
  %v1240 = vsel %vm1239, %v1232, %v1236
  %v1241 = vand.u32 2147483647, %v843
  %vm1242 = vcmp.eq.f32.partialorder %v1241, 8.507059e+37
  %v1243 = vand.u32 %v843, 2147483648
  %v1244 = vor.u32 1.1754944e-38, %v1243
  %v1245 = vsel %vm1242, %v1244, %v1240
  %v1246 = vrcp.pop %v844
  %v1247 = vmul.f32 %v844, %v1246
  %v1248 = vsub.f32 1.0, %v1247
  %v1249 = vmul.f32 %v1246, %v1248
  %v1250 = vadd.f32 %v1246, %v1249
  %vm1251 = vweird.f32 %v844
  %vm1252 = vweird.f32 %v1246
  %vm1253 = vmor %vm1251, %vm1252
  %v1254 = vsel %vm1253, %v1246, %v1250
  %v1255 = vand.u32 2147483647, %v844
  %vm1256 = vcmp.eq.f32.partialorder %v1255, 8.507059e+37
  %v1257 = vand.u32 %v844, 2147483648
  %v1258 = vor.u32 1.1754944e-38, %v1257
  %v1259 = vsel %vm1256, %v1258, %v1254
  %v1260 = vrcp.pop %v845
  %v1261 = vmul.f32 %v845, %v1260
  %v1262 = vsub.f32 1.0, %v1261
  %v1263 = vmul.f32 %v1260, %v1262
  %v1264 = vadd.f32 %v1260, %v1263
  %vm1265 = vweird.f32 %v845
  %vm1266 = vweird.f32 %v1260
  %vm1267 = vmor %vm1265, %vm1266
  %v1268 = vsel %vm1267, %v1260, %v1264
  %v1269 = vand.u32 2147483647, %v845
  %vm1270 = vcmp.eq.f32.partialorder %v1269, 8.507059e+37
  %v1271 = vand.u32 %v845, 2147483648
  %v1272 = vor.u32 1.1754944e-38, %v1271
  %v1273 = vsel %vm1270, %v1272, %v1268
  %v1274 = vrcp.pop %v846
  %v1275 = vmul.f32 %v846, %v1274
  %v1276 = vsub.f32 1.0, %v1275
  %v1277 = vmul.f32 %v1274, %v1276
  %v1278 = vadd.f32 %v1274, %v1277
  %vm1279 = vweird.f32 %v846
  %vm1280 = vweird.f32 %v1274
  %vm1281 = vmor %vm1279, %vm1280
  %v1282 = vsel %vm1281, %v1274, %v1278
  %v1283 = vand.u32 2147483647, %v846
  %vm1284 = vcmp.eq.f32.partialorder %v1283, 8.507059e+37
  %v1285 = vand.u32 %v846, 2147483648
  %v1286 = vor.u32 1.1754944e-38, %v1285
  %v1287 = vsel %vm1284, %v1286, %v1282
  %v1288 = vrcp.pop %v847
  %v1289 = vmul.f32 %v847, %v1288
  %v1290 = vsub.f32 1.0, %v1289
  %v1291 = vmul.f32 %v1288, %v1290
  %v1292 = vadd.f32 %v1288, %v1291
  %vm1293 = vweird.f32 %v847
  %vm1294 = vweird.f32 %v1288
  %vm1295 = vmor %vm1293, %vm1294
  %v1296 = vsel %vm1295, %v1288, %v1292
  %v1297 = vand.u32 2147483647, %v847
  %vm1298 = vcmp.eq.f32.partialorder %v1297, 8.507059e+37
  %v1299 = vand.u32 %v847, 2147483648
  %v1300 = vor.u32 1.1754944e-38, %v1299
  %v1301 = vsel %vm1298, %v1300, %v1296
  %v1302 = vrcp.pop %v848
  %v1303 = vmul.f32 %v848, %v1302
  %v1304 = vsub.f32 1.0, %v1303
  %v1305 = vmul.f32 %v1302, %v1304
  %v1306 = vadd.f32 %v1302, %v1305
  %vm1307 = vweird.f32 %v848
  %vm1308 = vweird.f32 %v1302
  %vm1309 = vmor %vm1307, %vm1308
  %v1310 = vsel %vm1309, %v1302, %v1306
  %v1311 = vand.u32 2147483647, %v848
  %vm1312 = vcmp.eq.f32.partialorder %v1311, 8.507059e+37
  %v1313 = vand.u32 %v848, 2147483648
  %v1314 = vor.u32 1.1754944e-38, %v1313
  %v1315 = vsel %vm1312, %v1314, %v1310
  %v1316 = vrcp.pop %v849
  %v1317 = vmul.f32 %v849, %v1316
  %v1318 = vsub.f32 1.0, %v1317
  %v1319 = vmul.f32 %v1316, %v1318
  %v1320 = vadd.f32 %v1316, %v1319
  %vm1321 = vweird.f32 %v849
  %vm1322 = vweird.f32 %v1316
  %vm1323 = vmor %vm1321, %vm1322
  %v1324 = vsel %vm1323, %v1316, %v1320
  %v1325 = vand.u32 2147483647, %v849
  %vm1326 = vcmp.eq.f32.partialorder %v1325, 8.507059e+37
  %v1327 = vand.u32 %v849, 2147483648
  %v1328 = vor.u32 1.1754944e-38, %v1327
  %v1329 = vsel %vm1326, %v1328, %v1324
  %v1330 = vrcp.pop %v850
  %v1331 = vmul.f32 %v850, %v1330
  %v1332 = vsub.f32 1.0, %v1331
  %v1333 = vmul.f32 %v1330, %v1332
  %v1334 = vadd.f32 %v1330, %v1333
  %vm1335 = vweird.f32 %v850
  %vm1336 = vweird.f32 %v1330
  %vm1337 = vmor %vm1335, %vm1336
  %v1338 = vsel %vm1337, %v1330, %v1334
  %v1339 = vand.u32 2147483647, %v850
  %vm1340 = vcmp.eq.f32.partialorder %v1339, 8.507059e+37
  %v1341 = vand.u32 %v850, 2147483648
  %v1342 = vor.u32 1.1754944e-38, %v1341
  %v1343 = vsel %vm1340, %v1342, %v1338
  %v1344 = vrcp.pop %v851
  %v1345 = vmul.f32 %v851, %v1344
  %v1346 = vsub.f32 1.0, %v1345
  %v1347 = vmul.f32 %v1344, %v1346
  %v1348 = vadd.f32 %v1344, %v1347
  %vm1349 = vweird.f32 %v851
  %vm1350 = vweird.f32 %v1344
  %vm1351 = vmor %vm1349, %vm1350
  %v1352 = vsel %vm1351, %v1344, %v1348
  %v1353 = vand.u32 2147483647, %v851
  %vm1354 = vcmp.eq.f32.partialorder %v1353, 8.507059e+37
  %v1355 = vand.u32 %v851, 2147483648
  %v1356 = vor.u32 1.1754944e-38, %v1355
  %v1357 = vsel %vm1354, %v1356, %v1352
  %v1358 = vrcp.pop %v852
  %v1359 = vmul.f32 %v852, %v1358
  %v1360 = vsub.f32 1.0, %v1359
  %v1361 = vmul.f32 %v1358, %v1360
  %v1362 = vadd.f32 %v1358, %v1361
  %vm1363 = vweird.f32 %v852
  %vm1364 = vweird.f32 %v1358
  %vm1365 = vmor %vm1363, %vm1364
  %v1366 = vsel %vm1365, %v1358, %v1362
  %v1367 = vand.u32 2147483647, %v852
  %vm1368 = vcmp.eq.f32.partialorder %v1367, 8.507059e+37
  %v1369 = vand.u32 %v852, 2147483648
  %v1370 = vor.u32 1.1754944e-38, %v1369
  %v1371 = vsel %vm1368, %v1370, %v1366
  %v1372 = vrcp.pop %v853
  %v1373 = vmul.f32 %v853, %v1372
  %v1374 = vsub.f32 1.0, %v1373
  %v1375 = vmul.f32 %v1372, %v1374
  %v1376 = vadd.f32 %v1372, %v1375
  %vm1377 = vweird.f32 %v853
  %vm1378 = vweird.f32 %v1372
  %vm1379 = vmor %vm1377, %vm1378
  %v1380 = vsel %vm1379, %v1372, %v1376
  %v1381 = vand.u32 2147483647, %v853
  %vm1382 = vcmp.eq.f32.partialorder %v1381, 8.507059e+37
  %v1383 = vand.u32 %v853, 2147483648
  %v1384 = vor.u32 1.1754944e-38, %v1383
  %v1385 = vsel %vm1382, %v1384, %v1380
  %v1386 = vrcp.pop %v854
  %v1387 = vmul.f32 %v854, %v1386
  %v1388 = vsub.f32 1.0, %v1387
  %v1389 = vmul.f32 %v1386, %v1388
  %v1390 = vadd.f32 %v1386, %v1389
  %vm1391 = vweird.f32 %v854
  %vm1392 = vweird.f32 %v1386
  %vm1393 = vmor %vm1391, %vm1392
  %v1394 = vsel %vm1393, %v1386, %v1390
  %v1395 = vand.u32 2147483647, %v854
  %vm1396 = vcmp.eq.f32.partialorder %v1395, 8.507059e+37
  %v1397 = vand.u32 %v854, 2147483648
  %v1398 = vor.u32 1.1754944e-38, %v1397
  %v1399 = vsel %vm1396, %v1398, %v1394
  %v1400 = vrcp.pop %v855
  %v1401 = vmul.f32 %v855, %v1400
  %v1402 = vsub.f32 1.0, %v1401
  %v1403 = vmul.f32 %v1400, %v1402
  %v1404 = vadd.f32 %v1400, %v1403
  %vm1405 = vweird.f32 %v855
  %vm1406 = vweird.f32 %v1400
  %vm1407 = vmor %vm1405, %vm1406
  %v1408 = vsel %vm1407, %v1400, %v1404
  %v1409 = vand.u32 2147483647, %v855
  %vm1410 = vcmp.eq.f32.partialorder %v1409, 8.507059e+37
  %v1411 = vand.u32 %v855, 2147483648
  %v1412 = vor.u32 1.1754944e-38, %v1411
  %v1413 = vsel %vm1410, %v1412, %v1408
  %v1414 = vrcp.pop %v856
  %v1415 = vmul.f32 %v856, %v1414
  %v1416 = vsub.f32 1.0, %v1415
  %v1417 = vmul.f32 %v1414, %v1416
  %v1418 = vadd.f32 %v1414, %v1417
  %vm1419 = vweird.f32 %v856
  %vm1420 = vweird.f32 %v1414
  %vm1421 = vmor %vm1419, %vm1420
  %v1422 = vsel %vm1421, %v1414, %v1418
  %v1423 = vand.u32 2147483647, %v856
  %vm1424 = vcmp.eq.f32.partialorder %v1423, 8.507059e+37
  %v1425 = vand.u32 %v856, 2147483648
  %v1426 = vor.u32 1.1754944e-38, %v1425
  %v1427 = vsel %vm1424, %v1426, %v1422
  %v1428 = vrcp.pop %v857
  %v1429 = vmul.f32 %v857, %v1428
  %v1430 = vsub.f32 1.0, %v1429
  %v1431 = vmul.f32 %v1428, %v1430
  %v1432 = vadd.f32 %v1428, %v1431
  %vm1433 = vweird.f32 %v857
  %vm1434 = vweird.f32 %v1428
  %vm1435 = vmor %vm1433, %vm1434
  %v1436 = vsel %vm1435, %v1428, %v1432
  %v1437 = vand.u32 2147483647, %v857
  %vm1438 = vcmp.eq.f32.partialorder %v1437, 8.507059e+37
  %v1439 = vand.u32 %v857, 2147483648
  %v1440 = vor.u32 1.1754944e-38, %v1439
  %v1441 = vsel %vm1438, %v1440, %v1436
  %v1442 = vrcp.pop %v858
  %v1443 = vmul.f32 %v858, %v1442
  %v1444 = vsub.f32 1.0, %v1443
  %v1445 = vmul.f32 %v1442, %v1444
  %v1446 = vadd.f32 %v1442, %v1445
  %vm1447 = vweird.f32 %v858
  %vm1448 = vweird.f32 %v1442
  %vm1449 = vmor %vm1447, %vm1448
  %v1450 = vsel %vm1449, %v1442, %v1446
  %v1451 = vand.u32 2147483647, %v858
  %vm1452 = vcmp.eq.f32.partialorder %v1451, 8.507059e+37
  %v1453 = vand.u32 %v858, 2147483648
  %v1454 = vor.u32 1.1754944e-38, %v1453
  %v1455 = vsel %vm1452, %v1454, %v1450
  %v1456 = vrcp.pop %v859
  %v1457 = vmul.f32 %v859, %v1456
  %v1458 = vsub.f32 1.0, %v1457
  %v1459 = vmul.f32 %v1456, %v1458
  %v1460 = vadd.f32 %v1456, %v1459
  %vm1461 = vweird.f32 %v859
  %vm1462 = vweird.f32 %v1456
  %vm1463 = vmor %vm1461, %vm1462
  %v1464 = vsel %vm1463, %v1456, %v1460
  %v1465 = vand.u32 2147483647, %v859
  %vm1466 = vcmp.eq.f32.partialorder %v1465, 8.507059e+37
  %v1467 = vand.u32 %v859, 2147483648
  %v1468 = vor.u32 1.1754944e-38, %v1467
  %v1469 = vsel %vm1466, %v1468, %v1464
  %v1470 = vrcp.pop %v860
  %v1471 = vmul.f32 %v860, %v1470
  %v1472 = vsub.f32 1.0, %v1471
  %v1473 = vmul.f32 %v1470, %v1472
  %v1474 = vadd.f32 %v1470, %v1473
  %vm1475 = vweird.f32 %v860
  %vm1476 = vweird.f32 %v1470
  %vm1477 = vmor %vm1475, %vm1476
  %v1478 = vsel %vm1477, %v1470, %v1474
  %v1479 = vand.u32 2147483647, %v860
  %vm1480 = vcmp.eq.f32.partialorder %v1479, 8.507059e+37
  %v1481 = vand.u32 %v860, 2147483648
  %v1482 = vor.u32 1.1754944e-38, %v1481
  %v1483 = vsel %vm1480, %v1482, %v1478
  %v1484 = vrcp.pop %v861
  %v1485 = vmul.f32 %v861, %v1484
  %v1486 = vsub.f32 1.0, %v1485
  %v1487 = vmul.f32 %v1484, %v1486
  %v1488 = vadd.f32 %v1484, %v1487
  %vm1489 = vweird.f32 %v861
  %vm1490 = vweird.f32 %v1484
  %vm1491 = vmor %vm1489, %vm1490
  %v1492 = vsel %vm1491, %v1484, %v1488
  %v1493 = vand.u32 2147483647, %v861
  %vm1494 = vcmp.eq.f32.partialorder %v1493, 8.507059e+37
  %v1495 = vand.u32 %v861, 2147483648
  %v1496 = vor.u32 1.1754944e-38, %v1495
  %v1497 = vsel %vm1494, %v1496, %v1492
  %v1498 = vrcp.pop %v862
  %v1499 = vmul.f32 %v862, %v1498
  %v1500 = vsub.f32 1.0, %v1499
  %v1501 = vmul.f32 %v1498, %v1500
  %v1502 = vadd.f32 %v1498, %v1501
  %vm1503 = vweird.f32 %v862
  %vm1504 = vweird.f32 %v1498
  %vm1505 = vmor %vm1503, %vm1504
  %v1506 = vsel %vm1505, %v1498, %v1502
  %v1507 = vand.u32 2147483647, %v862
  %vm1508 = vcmp.eq.f32.partialorder %v1507, 8.507059e+37
  %v1509 = vand.u32 %v862, 2147483648
  %v1510 = vor.u32 1.1754944e-38, %v1509
  %v1511 = vsel %vm1508, %v1510, %v1506
  %v1512 = vrcp.pop %v863
  %v1513 = vmul.f32 %v863, %v1512
  %v1514 = vsub.f32 1.0, %v1513
  %v1515 = vmul.f32 %v1512, %v1514
  %v1516 = vadd.f32 %v1512, %v1515
  %vm1517 = vweird.f32 %v863
  %vm1518 = vweird.f32 %v1512
  %vm1519 = vmor %vm1517, %vm1518
  %v1520 = vsel %vm1519, %v1512, %v1516
  %v1521 = vand.u32 2147483647, %v863
  %vm1522 = vcmp.eq.f32.partialorder %v1521, 8.507059e+37
  %v1523 = vand.u32 %v863, 2147483648
  %v1524 = vor.u32 1.1754944e-38, %v1523
  %v1525 = vsel %vm1522, %v1524, %v1520
  %v1526 = vrcp.pop %v864
  %v1527 = vmul.f32 %v864, %v1526
  %v1528 = vsub.f32 1.0, %v1527
  %v1529 = vmul.f32 %v1526, %v1528
  %v1530 = vadd.f32 %v1526, %v1529
  %vm1531 = vweird.f32 %v864
  %vm1532 = vweird.f32 %v1526
  %vm1533 = vmor %vm1531, %vm1532
  %v1534 = vsel %vm1533, %v1526, %v1530
  %v1535 = vand.u32 2147483647, %v864
  %vm1536 = vcmp.eq.f32.partialorder %v1535, 8.507059e+37
  %v1537 = vand.u32 %v864, 2147483648
  %v1538 = vor.u32 1.1754944e-38, %v1537
  %v1539 = vsel %vm1536, %v1538, %v1534
  %v1540 = vrcp.pop %v865
  %v1541 = vmul.f32 %v865, %v1540
  %v1542 = vsub.f32 1.0, %v1541
  %v1543 = vmul.f32 %v1540, %v1542
  %v1544 = vadd.f32 %v1540, %v1543
  %vm1545 = vweird.f32 %v865
  %vm1546 = vweird.f32 %v1540
  %vm1547 = vmor %vm1545, %vm1546
  %v1548 = vsel %vm1547, %v1540, %v1544
  %v1549 = vand.u32 2147483647, %v865
  %vm1550 = vcmp.eq.f32.partialorder %v1549, 8.507059e+37
  %v1551 = vand.u32 %v865, 2147483648
  %v1552 = vor.u32 1.1754944e-38, %v1551
  %v1553 = vsel %vm1550, %v1552, %v1548
  %v1554 = vrcp.pop %v866
  %v1555 = vmul.f32 %v866, %v1554
  %v1556 = vsub.f32 1.0, %v1555
  %v1557 = vmul.f32 %v1554, %v1556
  %v1558 = vadd.f32 %v1554, %v1557
  %vm1559 = vweird.f32 %v866
  %vm1560 = vweird.f32 %v1554
  %vm1561 = vmor %vm1559, %vm1560
  %v1562 = vsel %vm1561, %v1554, %v1558
  %v1563 = vand.u32 2147483647, %v866
  %vm1564 = vcmp.eq.f32.partialorder %v1563, 8.507059e+37
  %v1565 = vand.u32 %v866, 2147483648
  %v1566 = vor.u32 1.1754944e-38, %v1565
  %v1567 = vsel %vm1564, %v1566, %v1562
  %v1568 = vrcp.pop %v867
  %v1569 = vmul.f32 %v867, %v1568
  %v1570 = vsub.f32 1.0, %v1569
  %v1571 = vmul.f32 %v1568, %v1570
  %v1572 = vadd.f32 %v1568, %v1571
  %vm1573 = vweird.f32 %v867
  %vm1574 = vweird.f32 %v1568
  %vm1575 = vmor %vm1573, %vm1574
  %v1576 = vsel %vm1575, %v1568, %v1572
  %v1577 = vand.u32 2147483647, %v867
  %vm1578 = vcmp.eq.f32.partialorder %v1577, 8.507059e+37
  %v1579 = vand.u32 %v867, 2147483648
  %v1580 = vor.u32 1.1754944e-38, %v1579
  %v1581 = vsel %vm1578, %v1580, %v1576
  %v1582 = vrcp.pop %v868
  %v1583 = vmul.f32 %v868, %v1582
  %v1584 = vsub.f32 1.0, %v1583
  %v1585 = vmul.f32 %v1582, %v1584
  %v1586 = vadd.f32 %v1582, %v1585
  %vm1587 = vweird.f32 %v868
  %vm1588 = vweird.f32 %v1582
  %vm1589 = vmor %vm1587, %vm1588
  %v1590 = vsel %vm1589, %v1582, %v1586
  %v1591 = vand.u32 2147483647, %v868
  %vm1592 = vcmp.eq.f32.partialorder %v1591, 8.507059e+37
  %v1593 = vand.u32 %v868, 2147483648
  %v1594 = vor.u32 1.1754944e-38, %v1593
  %v1595 = vsel %vm1592, %v1594, %v1590
  %v1596 = vrcp.pop %v869
  %v1597 = vmul.f32 %v869, %v1596
  %v1598 = vsub.f32 1.0, %v1597
  %v1599 = vmul.f32 %v1596, %v1598
  %v1600 = vadd.f32 %v1596, %v1599
  %vm1601 = vweird.f32 %v869
  %vm1602 = vweird.f32 %v1596
  %vm1603 = vmor %vm1601, %vm1602
  %v1604 = vsel %vm1603, %v1596, %v1600
  %v1605 = vand.u32 2147483647, %v869
  %vm1606 = vcmp.eq.f32.partialorder %v1605, 8.507059e+37
  %v1607 = vand.u32 %v869, 2147483648
  %v1608 = vor.u32 1.1754944e-38, %v1607
  %v1609 = vsel %vm1606, %v1608, %v1604
  %v1610 = vrcp.pop %v870
  %v1611 = vmul.f32 %v870, %v1610
  %v1612 = vsub.f32 1.0, %v1611
  %v1613 = vmul.f32 %v1610, %v1612
  %v1614 = vadd.f32 %v1610, %v1613
  %vm1615 = vweird.f32 %v870
  %vm1616 = vweird.f32 %v1610
  %vm1617 = vmor %vm1615, %vm1616
  %v1618 = vsel %vm1617, %v1610, %v1614
  %v1619 = vand.u32 2147483647, %v870
  %vm1620 = vcmp.eq.f32.partialorder %v1619, 8.507059e+37
  %v1621 = vand.u32 %v870, 2147483648
  %v1622 = vor.u32 1.1754944e-38, %v1621
  %v1623 = vsel %vm1620, %v1622, %v1618
  %v1624 = vrcp.pop %v871
  %v1625 = vmul.f32 %v871, %v1624
  %v1626 = vsub.f32 1.0, %v1625
  %v1627 = vmul.f32 %v1624, %v1626
  %v1628 = vadd.f32 %v1624, %v1627
  %vm1629 = vweird.f32 %v871
  %vm1630 = vweird.f32 %v1624
  %vm1631 = vmor %vm1629, %vm1630
  %v1632 = vsel %vm1631, %v1624, %v1628
  %v1633 = vand.u32 2147483647, %v871
  %vm1634 = vcmp.eq.f32.partialorder %v1633, 8.507059e+37
  %v1635 = vand.u32 %v871, 2147483648
  %v1636 = vor.u32 1.1754944e-38, %v1635
  %v1637 = vsel %vm1634, %v1636, %v1632
  %v1638 = vrcp.pop %v872
  %v1639 = vmul.f32 %v872, %v1638
  %v1640 = vsub.f32 1.0, %v1639
  %v1641 = vmul.f32 %v1638, %v1640
  %v1642 = vadd.f32 %v1638, %v1641
  %vm1643 = vweird.f32 %v872
  %vm1644 = vweird.f32 %v1638
  %vm1645 = vmor %vm1643, %vm1644
  %v1646 = vsel %vm1645, %v1638, %v1642
  %v1647 = vand.u32 2147483647, %v872
  %vm1648 = vcmp.eq.f32.partialorder %v1647, 8.507059e+37
  %v1649 = vand.u32 %v872, 2147483648
  %v1650 = vor.u32 1.1754944e-38, %v1649
  %v1651 = vsel %vm1648, %v1650, %v1646
  %v1652 = vrcp.pop %v873
  %v1653 = vmul.f32 %v873, %v1652
  %v1654 = vsub.f32 1.0, %v1653
  %v1655 = vmul.f32 %v1652, %v1654
  %v1656 = vadd.f32 %v1652, %v1655
  %vm1657 = vweird.f32 %v873
  %vm1658 = vweird.f32 %v1652
  %vm1659 = vmor %vm1657, %vm1658
  %v1660 = vsel %vm1659, %v1652, %v1656
  %v1661 = vand.u32 2147483647, %v873
  %vm1662 = vcmp.eq.f32.partialorder %v1661, 8.507059e+37
  %v1663 = vand.u32 %v873, 2147483648
  %v1664 = vor.u32 1.1754944e-38, %v1663
  %v1665 = vsel %vm1662, %v1664, %v1660
  %v1666 = vrcp.pop %v874
  %v1667 = vmul.f32 %v874, %v1666
  %v1668 = vsub.f32 1.0, %v1667
  %v1669 = vmul.f32 %v1666, %v1668
  %v1670 = vadd.f32 %v1666, %v1669
  %vm1671 = vweird.f32 %v874
  %vm1672 = vweird.f32 %v1666
  %vm1673 = vmor %vm1671, %vm1672
  %v1674 = vsel %vm1673, %v1666, %v1670
  %v1675 = vand.u32 2147483647, %v874
  %vm1676 = vcmp.eq.f32.partialorder %v1675, 8.507059e+37
  %v1677 = vand.u32 %v874, 2147483648
  %v1678 = vor.u32 1.1754944e-38, %v1677
  %v1679 = vsel %vm1676, %v1678, %v1674
  %v1680 = vrcp.pop %v875
  %v1681 = vmul.f32 %v875, %v1680
  %v1682 = vsub.f32 1.0, %v1681
  %v1683 = vmul.f32 %v1680, %v1682
  %v1684 = vadd.f32 %v1680, %v1683
  %vm1685 = vweird.f32 %v875
  %vm1686 = vweird.f32 %v1680
  %vm1687 = vmor %vm1685, %vm1686
  %v1688 = vsel %vm1687, %v1680, %v1684
  %v1689 = vand.u32 2147483647, %v875
  %vm1690 = vcmp.eq.f32.partialorder %v1689, 8.507059e+37
  %v1691 = vand.u32 %v875, 2147483648
  %v1692 = vor.u32 1.1754944e-38, %v1691
  %v1693 = vsel %vm1690, %v1692, %v1688
  %v1694 = vrcp.pop %v876
  %v1695 = vmul.f32 %v876, %v1694
  %v1696 = vsub.f32 1.0, %v1695
  %v1697 = vmul.f32 %v1694, %v1696
  %v1698 = vadd.f32 %v1694, %v1697
  %vm1699 = vweird.f32 %v876
  %vm1700 = vweird.f32 %v1694
  %vm1701 = vmor %vm1699, %vm1700
  %v1702 = vsel %vm1701, %v1694, %v1698
  %v1703 = vand.u32 2147483647, %v876
  %vm1704 = vcmp.eq.f32.partialorder %v1703, 8.507059e+37
  %v1705 = vand.u32 %v876, 2147483648
  %v1706 = vor.u32 1.1754944e-38, %v1705
  %v1707 = vsel %vm1704, %v1706, %v1702
  %v1708 = vrcp.pop %v877
  %v1709 = vmul.f32 %v877, %v1708
  %v1710 = vsub.f32 1.0, %v1709
  %v1711 = vmul.f32 %v1708, %v1710
  %v1712 = vadd.f32 %v1708, %v1711
  %vm1713 = vweird.f32 %v877
  %vm1714 = vweird.f32 %v1708
  %vm1715 = vmor %vm1713, %vm1714
  %v1716 = vsel %vm1715, %v1708, %v1712
  %v1717 = vand.u32 2147483647, %v877
  %vm1718 = vcmp.eq.f32.partialorder %v1717, 8.507059e+37
  %v1719 = vand.u32 %v877, 2147483648
  %v1720 = vor.u32 1.1754944e-38, %v1719
  %v1721 = vsel %vm1718, %v1720, %v1716
  %v1722 = vrcp.pop %v878
  %v1723 = vmul.f32 %v878, %v1722
  %v1724 = vsub.f32 1.0, %v1723
  %v1725 = vmul.f32 %v1722, %v1724
  %v1726 = vadd.f32 %v1722, %v1725
  %vm1727 = vweird.f32 %v878
  %vm1728 = vweird.f32 %v1722
  %vm1729 = vmor %vm1727, %vm1728
  %v1730 = vsel %vm1729, %v1722, %v1726
  %v1731 = vand.u32 2147483647, %v878
  %vm1732 = vcmp.eq.f32.partialorder %v1731, 8.507059e+37
  %v1733 = vand.u32 %v878, 2147483648
  %v1734 = vor.u32 1.1754944e-38, %v1733
  %v1735 = vsel %vm1732, %v1734, %v1730
  %v1736 = vrcp.pop %v879
  %v1737 = vmul.f32 %v879, %v1736
  %v1738 = vsub.f32 1.0, %v1737
  %v1739 = vmul.f32 %v1736, %v1738
  %v1740 = vadd.f32 %v1736, %v1739
  %vm1741 = vweird.f32 %v879
  %vm1742 = vweird.f32 %v1736
  %vm1743 = vmor %vm1741, %vm1742
  %v1744 = vsel %vm1743, %v1736, %v1740
  %v1745 = vand.u32 2147483647, %v879
  %vm1746 = vcmp.eq.f32.partialorder %v1745, 8.507059e+37
  %v1747 = vand.u32 %v879, 2147483648
  %v1748 = vor.u32 1.1754944e-38, %v1747
  %v1749 = vsel %vm1746, %v1748, %v1744
  %v1750 = vrcp.pop %v880
  %v1751 = vmul.f32 %v880, %v1750
  %v1752 = vsub.f32 1.0, %v1751
  %v1753 = vmul.f32 %v1750, %v1752
  %v1754 = vadd.f32 %v1750, %v1753
  %vm1755 = vweird.f32 %v880
  %vm1756 = vweird.f32 %v1750
  %vm1757 = vmor %vm1755, %vm1756
  %v1758 = vsel %vm1757, %v1750, %v1754
  %v1759 = vand.u32 2147483647, %v880
  %vm1760 = vcmp.eq.f32.partialorder %v1759, 8.507059e+37
  %v1761 = vand.u32 %v880, 2147483648
  %v1762 = vor.u32 1.1754944e-38, %v1761
  %v1763 = vsel %vm1760, %v1762, %v1758
  %v1764 = vrcp.pop %v881
  %v1765 = vmul.f32 %v881, %v1764
  %v1766 = vsub.f32 1.0, %v1765
  %v1767 = vmul.f32 %v1764, %v1766
  %v1768 = vadd.f32 %v1764, %v1767
  %vm1769 = vweird.f32 %v881
  %vm1770 = vweird.f32 %v1764
  %vm1771 = vmor %vm1769, %vm1770
  %v1772 = vsel %vm1771, %v1764, %v1768
  %v1773 = vand.u32 2147483647, %v881
  %vm1774 = vcmp.eq.f32.partialorder %v1773, 8.507059e+37
  %v1775 = vand.u32 %v881, 2147483648
  %v1776 = vor.u32 1.1754944e-38, %v1775
  %v1777 = vsel %vm1774, %v1776, %v1772
  %v1778 = vmul.f32 %v562, %v895
  %v1779 = vmul.f32 %v563, %v909
  %v1780 = vmul.f32 %v564, %v923
  %v1781 = vmul.f32 %v565, %v937
  %v1782 = vmul.f32 %v566, %v951
  %v1783 = vmul.f32 %v567, %v965
  %v1784 = vmul.f32 %v568, %v979
  %v1785 = vmul.f32 %v569, %v993
  %v1786 = vmul.f32 %v570, %v1007
  %v1787 = vmul.f32 %v571, %v1021
  %v1788 = vmul.f32 %v572, %v1035
  %v1789 = vmul.f32 %v573, %v1049
  %v1790 = vmul.f32 %v574, %v1063
  %v1791 = vmul.f32 %v575, %v1077
  %v1792 = vmul.f32 %v576, %v1091
  %v1793 = vmul.f32 %v577, %v1105
  %v1794 = vmul.f32 %v578, %v1119
  %v1795 = vmul.f32 %v579, %v1133
  %v1796 = vmul.f32 %v580, %v1147
  %v1797 = vmul.f32 %v581, %v1161
  %v1798 = vmul.f32 %v582, %v1175
  %v1799 = vmul.f32 %v583, %v1189
  %v1800 = vmul.f32 %v584, %v1203
  %v1801 = vmul.f32 %v585, %v1217
  %v1802 = vmul.f32 %v586, %v1231
  %v1803 = vmul.f32 %v587, %v1245
  %v1804 = vmul.f32 %v588, %v1259
  %v1805 = vmul.f32 %v589, %v1273
  %v1806 = vmul.f32 %v590, %v1287
  %v1807 = vmul.f32 %v591, %v1301
  %v1808 = vmul.f32 %v592, %v1315
  %v1809 = vmul.f32 %v593, %v1329
  %v1810 = vmul.f32 %v594, %v1343
  %v1811 = vmul.f32 %v595, %v1357
  %v1812 = vmul.f32 %v596, %v1371
  %v1813 = vmul.f32 %v597, %v1385
  %v1814 = vmul.f32 %v598, %v1399
  %v1815 = vmul.f32 %v599, %v1413
  %v1816 = vmul.f32 %v600, %v1427
  %v1817 = vmul.f32 %v601, %v1441
  %v1818 = vmul.f32 %v602, %v1455
  %v1819 = vmul.f32 %v603, %v1469
  %v1820 = vmul.f32 %v604, %v1483
  %v1821 = vmul.f32 %v605, %v1497
  %v1822 = vmul.f32 %v606, %v1511
  %v1823 = vmul.f32 %v607, %v1525
  %v1824 = vmul.f32 %v608, %v1539
  %v1825 = vmul.f32 %v609, %v1553
  %v1826 = vmul.f32 %v610, %v1567
  %v1827 = vmul.f32 %v611, %v1581
  %v1828 = vmul.f32 %v612, %v1595
  %v1829 = vmul.f32 %v613, %v1609
  %v1830 = vmul.f32 %v614, %v1623
  %v1831 = vmul.f32 %v615, %v1637
  %v1832 = vmul.f32 %v616, %v1651
  %v1833 = vmul.f32 %v617, %v1665
  %v1834 = vmul.f32 %v618, %v1679
  %v1835 = vmul.f32 %v619, %v1693
  %v1836 = vmul.f32 %v620, %v1707
  %v1837 = vmul.f32 %v621, %v1721
  %v1838 = vmul.f32 %v622, %v1735
  %v1839 = vmul.f32 %v623, %v1749
  %v1840 = vmul.f32 %v624, %v1763
  %v1841 = vmul.f32 %v625, %v1777
  %1842 = vst.msk [vmem:[%s4] sm:$0xff] %vm84, %v1778
  %1843 = vst.msk [vmem:[%s4 + $0x8] sm:$0xff] %vm84, %v1779
  %1844 = vst.msk [vmem:[%s4 + $0x10] sm:$0xff] %vm84, %v1780
  %1845 = vst.msk [vmem:[%s4 + $0x18] sm:$0xff] %vm84, %v1781
  %1846 = vst.msk [vmem:[%s4 + $0x20] sm:$0xff] %vm84, %v1782
  %1847 = vst.msk [vmem:[%s4 + $0x28] sm:$0xff] %vm84, %v1783
  %1848 = vst.msk [vmem:[%s4 + $0x30] sm:$0xff] %vm84, %v1784
  %1849 = vst.msk [vmem:[%s4 + $0x38] sm:$0xff] %vm84, %v1785
  %1850 = vst.msk [vmem:[%s4 + $0x40] sm:$0xff] %vm84, %v1786
  %1851 = vst.msk [vmem:[%s4 + $0x48] sm:$0xff] %vm84, %v1787
  %1852 = vst.msk [vmem:[%s4 + $0x50] sm:$0xff] %vm84, %v1788
  %1853 = vst.msk [vmem:[%s4 + $0x58] sm:$0xff] %vm84, %v1789
  %1854 = vst.msk [vmem:[%s4 + $0x60] sm:$0xff] %vm84, %v1790
  %1855 = vst.msk [vmem:[%s4 + $0x68] sm:$0xff] %vm84, %v1791
  %1856 = vst.msk [vmem:[%s4 + $0x70] sm:$0xff] %vm84, %v1792
  %1857 = vst.msk [vmem:[%s4 + $0x78] sm:$0xff] %vm84, %v1793
  %1858 = vst.msk [vmem:[%s4 + $0x80] sm:$0xff] %vm84, %v1794
  %1859 = vst.msk [vmem:[%s4 + $0x88] sm:$0xff] %vm84, %v1795
  %1860 = vst.msk [vmem:[%s4 + $0x90] sm:$0xff] %vm84, %v1796
  %1861 = vst.msk [vmem:[%s4 + $0x98] sm:$0xff] %vm84, %v1797
  %1862 = vst.msk [vmem:[%s4 + $0xa0] sm:$0xff] %vm84, %v1798
  %1863 = vst.msk [vmem:[%s4 + $0xa8] sm:$0xff] %vm84, %v1799
  %1864 = vst.msk [vmem:[%s4 + $0xb0] sm:$0xff] %vm84, %v1800
  %1865 = vst.msk [vmem:[%s4 + $0xb8] sm:$0xff] %vm84, %v1801
  %1866 = vst.msk [vmem:[%s4 + $0xc0] sm:$0xff] %vm84, %v1802
  %1867 = vst.msk [vmem:[%s4 + $0xc8] sm:$0xff] %vm84, %v1803
  %1868 = vst.msk [vmem:[%s4 + $0xd0] sm:$0xff] %vm84, %v1804
  %1869 = vst.msk [vmem:[%s4 + $0xd8] sm:$0xff] %vm84, %v1805
  %1870 = vst.msk [vmem:[%s4 + $0xe0] sm:$0xff] %vm84, %v1806
  %1871 = vst.msk [vmem:[%s4 + $0xe8] sm:$0xff] %vm84, %v1807
  %1872 = vst.msk [vmem:[%s4 + $0xf0] sm:$0xff] %vm84, %v1808
  %1873 = vst.msk [vmem:[%s4 + $0xf8] sm:$0xff] %vm84, %v1809
  %1874 = vst.msk [vmem:[%s4 + $0x100] sm:$0xff] %vm84, %v1810
  %1875 = vst.msk [vmem:[%s4 + $0x108] sm:$0xff] %vm84, %v1811
  %1876 = vst.msk [vmem:[%s4 + $0x110] sm:$0xff] %vm84, %v1812
  %1877 = vst.msk [vmem:[%s4 + $0x118] sm:$0xff] %vm84, %v1813
  %1878 = vst.msk [vmem:[%s4 + $0x120] sm:$0xff] %vm84, %v1814
  %1879 = vst.msk [vmem:[%s4 + $0x128] sm:$0xff] %vm84, %v1815
  %1880 = vst.msk [vmem:[%s4 + $0x130] sm:$0xff] %vm84, %v1816
  %1881 = vst.msk [vmem:[%s4 + $0x138] sm:$0xff] %vm84, %v1817
  %1882 = vst.msk [vmem:[%s4 + $0x140] sm:$0xff] %vm84, %v1818
  %1883 = vst.msk [vmem:[%s4 + $0x148] sm:$0xff] %vm84, %v1819
  %1884 = vst.msk [vmem:[%s4 + $0x150] sm:$0xff] %vm84, %v1820
  %1885 = vst.msk [vmem:[%s4 + $0x158] sm:$0xff] %vm84, %v1821
  %1886 = vst.msk [vmem:[%s4 + $0x160] sm:$0xff] %vm84, %v1822
  %1887 = vst.msk [vmem:[%s4 + $0x168] sm:$0xff] %vm84, %v1823
  %1888 = vst.msk [vmem:[%s4 + $0x170] sm:$0xff] %vm84, %v1824
  %1889 = vst.msk [vmem:[%s4 + $0x178] sm:$0xff] %vm84, %v1825
  %1890 = vst.msk [vmem:[%s4 + $0x180] sm:$0xff] %vm84, %v1826
  %1891 = vst.msk [vmem:[%s4 + $0x188] sm:$0xff] %vm84, %v1827
  %1892 = vst.msk [vmem:[%s4 + $0x190] sm:$0xff] %vm84, %v1828
  %1893 = vst.msk [vmem:[%s4 + $0x198] sm:$0xff] %vm84, %v1829
  %1894 = vst.msk [vmem:[%s4 + $0x1a0] sm:$0xff] %vm84, %v1830
  %1895 = vst.msk [vmem:[%s4 + $0x1a8] sm:$0xff] %vm84, %v1831
  %1896 = vst.msk [vmem:[%s4 + $0x1b0] sm:$0xff] %vm84, %v1832
  %1897 = vst.msk [vmem:[%s4 + $0x1b8] sm:$0xff] %vm84, %v1833
  %1898 = vst.msk [vmem:[%s4 + $0x1c0] sm:$0xff] %vm84, %v1834
  %1899 = vst.msk [vmem:[%s4 + $0x1c8] sm:$0xff] %vm84, %v1835
  %1900 = vst.msk [vmem:[%s4 + $0x1d0] sm:$0xff] %vm84, %v1836
  %1901 = vst.msk [vmem:[%s4 + $0x1d8] sm:$0xff] %vm84, %v1837
  %1902 = vst.msk [vmem:[%s4 + $0x1e0] sm:$0xff] %vm84, %v1838
  %1903 = vst.msk [vmem:[%s4 + $0x1e8] sm:$0xff] %vm84, %v1839
  %1904 = vst.msk [vmem:[%s4 + $0x1f0] sm:$0xff] %vm84, %v1840
  %1905 = vst.msk [vmem:[%s4 + $0x1f8] sm:$0xff] %vm84, %v1841
  %1970 = vrot.lane.b32.xlu0 %v1778, 124
  %v1971 = vpop.permute.xlu0 %1970
  %1972 = vrot.lane.b32.xlu0 %v1779, 124
  %v1973 = vpop.permute.xlu0 %1972
  %1974 = vrot.lane.b32.xlu0 %v1780, 124
  %v1975 = vpop.permute.xlu0 %1974
  %1976 = vrot.lane.b32.xlu0 %v1781, 124
  %v1977 = vpop.permute.xlu0 %1976
  %1978 = vrot.lane.b32.xlu0 %v1782, 124
  %v1979 = vpop.permute.xlu0 %1978
  %1980 = vrot.lane.b32.xlu0 %v1783, 124
  %v1981 = vpop.permute.xlu0 %1980
  %1982 = vrot.lane.b32.xlu0 %v1784, 124
  %v1983 = vpop.permute.xlu0 %1982
  %1984 = vrot.lane.b32.xlu0 %v1785, 124
  %v1985 = vpop.permute.xlu0 %1984
  %1986 = vrot.lane.b32.xlu0 %v1786, 124
  %v1987 = vpop.permute.xlu0 %1986
  %1988 = vrot.lane.b32.xlu0 %v1787, 124
  %v1989 = vpop.permute.xlu0 %1988
  %1990 = vrot.lane.b32.xlu0 %v1788, 124
  %v1991 = vpop.permute.xlu0 %1990
  %1992 = vrot.lane.b32.xlu0 %v1789, 124
  %v1993 = vpop.permute.xlu0 %1992
  %1994 = vrot.lane.b32.xlu0 %v1790, 124
  %v1995 = vpop.permute.xlu0 %1994
  %1996 = vrot.lane.b32.xlu0 %v1791, 124
  %v1997 = vpop.permute.xlu0 %1996
  %1998 = vrot.lane.b32.xlu0 %v1792, 124
  %v1999 = vpop.permute.xlu0 %1998
  %2000 = vrot.lane.b32.xlu0 %v1793, 124
  %v2001 = vpop.permute.xlu0 %2000
  %2002 = vrot.lane.b32.xlu0 %v1794, 124
  %v2003 = vpop.permute.xlu0 %2002
  %2004 = vrot.lane.b32.xlu0 %v1795, 124
  %v2005 = vpop.permute.xlu0 %2004
  %2006 = vrot.lane.b32.xlu0 %v1796, 124
  %v2007 = vpop.permute.xlu0 %2006
  %2008 = vrot.lane.b32.xlu0 %v1797, 124
  %v2009 = vpop.permute.xlu0 %2008
  %2010 = vrot.lane.b32.xlu0 %v1798, 124
  %v2011 = vpop.permute.xlu0 %2010
  %2012 = vrot.lane.b32.xlu0 %v1799, 124
  %v2013 = vpop.permute.xlu0 %2012
  %2014 = vrot.lane.b32.xlu0 %v1800, 124
  %v2015 = vpop.permute.xlu0 %2014
  %2016 = vrot.lane.b32.xlu0 %v1801, 124
  %v2017 = vpop.permute.xlu0 %2016
  %2018 = vrot.lane.b32.xlu0 %v1802, 124
  %v2019 = vpop.permute.xlu0 %2018
  %2020 = vrot.lane.b32.xlu0 %v1803, 124
  %v2021 = vpop.permute.xlu0 %2020
  %2022 = vrot.lane.b32.xlu0 %v1804, 124
  %v2023 = vpop.permute.xlu0 %2022
  %2024 = vrot.lane.b32.xlu0 %v1805, 124
  %v2025 = vpop.permute.xlu0 %2024
  %2026 = vrot.lane.b32.xlu0 %v1806, 124
  %v2027 = vpop.permute.xlu0 %2026
  %2028 = vrot.lane.b32.xlu0 %v1807, 124
  %v2029 = vpop.permute.xlu0 %2028
  %2030 = vrot.lane.b32.xlu0 %v1808, 124
  %v2031 = vpop.permute.xlu0 %2030
  %2032 = vrot.lane.b32.xlu0 %v1809, 124
  %v2033 = vpop.permute.xlu0 %2032
  %2034 = vrot.lane.b32.xlu0 %v1810, 124
  %v2035 = vpop.permute.xlu0 %2034
  %2036 = vrot.lane.b32.xlu0 %v1811, 124
  %v2037 = vpop.permute.xlu0 %2036
  %2038 = vrot.lane.b32.xlu0 %v1812, 124
  %v2039 = vpop.permute.xlu0 %2038
  %2040 = vrot.lane.b32.xlu0 %v1813, 124
  %v2041 = vpop.permute.xlu0 %2040
  %2042 = vrot.lane.b32.xlu0 %v1814, 124
  %v2043 = vpop.permute.xlu0 %2042
  %2044 = vrot.lane.b32.xlu0 %v1815, 124
  %v2045 = vpop.permute.xlu0 %2044
  %2046 = vrot.lane.b32.xlu0 %v1816, 124
  %v2047 = vpop.permute.xlu0 %2046
  %2048 = vrot.lane.b32.xlu0 %v1817, 124
  %v2049 = vpop.permute.xlu0 %2048
  %2050 = vrot.lane.b32.xlu0 %v1818, 124
  %v2051 = vpop.permute.xlu0 %2050
  %2052 = vrot.lane.b32.xlu0 %v1819, 124
  %v2053 = vpop.permute.xlu0 %2052
  %2054 = vrot.lane.b32.xlu0 %v1820, 124
  %v2055 = vpop.permute.xlu0 %2054
  %2056 = vrot.lane.b32.xlu0 %v1821, 124
  %v2057 = vpop.permute.xlu0 %2056
  %2058 = vrot.lane.b32.xlu0 %v1822, 124
  %v2059 = vpop.permute.xlu0 %2058
  %2060 = vrot.lane.b32.xlu0 %v1823, 124
  %v2061 = vpop.permute.xlu0 %2060
  %2062 = vrot.lane.b32.xlu0 %v1824, 124
  %v2063 = vpop.permute.xlu0 %2062
  %2064 = vrot.lane.b32.xlu0 %v1825, 124
  %v2065 = vpop.permute.xlu0 %2064
  %2066 = vrot.lane.b32.xlu0 %v1826, 124
  %v2067 = vpop.permute.xlu0 %2066
  %2068 = vrot.lane.b32.xlu0 %v1827, 124
  %v2069 = vpop.permute.xlu0 %2068
  %2070 = vrot.lane.b32.xlu0 %v1828, 124
  %v2071 = vpop.permute.xlu0 %2070
  %2072 = vrot.lane.b32.xlu0 %v1829, 124
  %v2073 = vpop.permute.xlu0 %2072
  %2074 = vrot.lane.b32.xlu0 %v1830, 124
  %v2075 = vpop.permute.xlu0 %2074
  %2076 = vrot.lane.b32.xlu0 %v1831, 124
  %v2077 = vpop.permute.xlu0 %2076
  %2078 = vrot.lane.b32.xlu0 %v1832, 124
  %v2079 = vpop.permute.xlu0 %2078
  %2080 = vrot.lane.b32.xlu0 %v1833, 124
  %v2081 = vpop.permute.xlu0 %2080
  %2082 = vrot.lane.b32.xlu0 %v1834, 124
  %v2083 = vpop.permute.xlu0 %2082
  %2084 = vrot.lane.b32.xlu0 %v1835, 124
  %v2085 = vpop.permute.xlu0 %2084
  %2086 = vrot.lane.b32.xlu0 %v1836, 124
  %v2087 = vpop.permute.xlu0 %2086
  %2088 = vrot.lane.b32.xlu0 %v1837, 124
  %v2089 = vpop.permute.xlu0 %2088
  %2090 = vrot.lane.b32.xlu0 %v1838, 124
  %v2091 = vpop.permute.xlu0 %2090
  %2092 = vrot.lane.b32.xlu0 %v1839, 124
  %v2093 = vpop.permute.xlu0 %2092
  %2094 = vrot.lane.b32.xlu0 %v1840, 124
  %v2095 = vpop.permute.xlu0 %2094
  %2096 = vrot.lane.b32.xlu0 %v1841, 124
  %v2097 = vpop.permute.xlu0 %2096
  %2162 = vst.msk [vmem:[%s5] sm:$0xff] %vm84, %v1971
  %2163 = vst.msk [vmem:[%s5 + $0x8] sm:$0xff] %vm84, %v1973
  %2164 = vst.msk [vmem:[%s5 + $0x10] sm:$0xff] %vm84, %v1975
  %2165 = vst.msk [vmem:[%s5 + $0x18] sm:$0xff] %vm84, %v1977
  %2166 = vst.msk [vmem:[%s5 + $0x20] sm:$0xff] %vm84, %v1979
  %2167 = vst.msk [vmem:[%s5 + $0x28] sm:$0xff] %vm84, %v1981
  %2168 = vst.msk [vmem:[%s5 + $0x30] sm:$0xff] %vm84, %v1983
  %2169 = vst.msk [vmem:[%s5 + $0x38] sm:$0xff] %vm84, %v1985
  %2170 = vst.msk [vmem:[%s5 + $0x40] sm:$0xff] %vm84, %v1987
  %2171 = vst.msk [vmem:[%s5 + $0x48] sm:$0xff] %vm84, %v1989
  %2172 = vst.msk [vmem:[%s5 + $0x50] sm:$0xff] %vm84, %v1991
  %2173 = vst.msk [vmem:[%s5 + $0x58] sm:$0xff] %vm84, %v1993
  %2174 = vst.msk [vmem:[%s5 + $0x60] sm:$0xff] %vm84, %v1995
  %2175 = vst.msk [vmem:[%s5 + $0x68] sm:$0xff] %vm84, %v1997
  %2176 = vst.msk [vmem:[%s5 + $0x70] sm:$0xff] %vm84, %v1999
  %2177 = vst.msk [vmem:[%s5 + $0x78] sm:$0xff] %vm84, %v2001
  %2178 = vst.msk [vmem:[%s5 + $0x80] sm:$0xff] %vm84, %v2003
  %2179 = vst.msk [vmem:[%s5 + $0x88] sm:$0xff] %vm84, %v2005
  %2180 = vst.msk [vmem:[%s5 + $0x90] sm:$0xff] %vm84, %v2007
  %2181 = vst.msk [vmem:[%s5 + $0x98] sm:$0xff] %vm84, %v2009
  %2182 = vst.msk [vmem:[%s5 + $0xa0] sm:$0xff] %vm84, %v2011
  %2183 = vst.msk [vmem:[%s5 + $0xa8] sm:$0xff] %vm84, %v2013
  %2184 = vst.msk [vmem:[%s5 + $0xb0] sm:$0xff] %vm84, %v2015
  %2185 = vst.msk [vmem:[%s5 + $0xb8] sm:$0xff] %vm84, %v2017
  %2186 = vst.msk [vmem:[%s5 + $0xc0] sm:$0xff] %vm84, %v2019
  %2187 = vst.msk [vmem:[%s5 + $0xc8] sm:$0xff] %vm84, %v2021
  %2188 = vst.msk [vmem:[%s5 + $0xd0] sm:$0xff] %vm84, %v2023
  %2189 = vst.msk [vmem:[%s5 + $0xd8] sm:$0xff] %vm84, %v2025
  %2190 = vst.msk [vmem:[%s5 + $0xe0] sm:$0xff] %vm84, %v2027
  %2191 = vst.msk [vmem:[%s5 + $0xe8] sm:$0xff] %vm84, %v2029
  %2192 = vst.msk [vmem:[%s5 + $0xf0] sm:$0xff] %vm84, %v2031
  %2193 = vst.msk [vmem:[%s5 + $0xf8] sm:$0xff] %vm84, %v2033
  %2194 = vst.msk [vmem:[%s5 + $0x100] sm:$0xff] %vm84, %v2035
  %2195 = vst.msk [vmem:[%s5 + $0x108] sm:$0xff] %vm84, %v2037
  %2196 = vst.msk [vmem:[%s5 + $0x110] sm:$0xff] %vm84, %v2039
  %2197 = vst.msk [vmem:[%s5 + $0x118] sm:$0xff] %vm84, %v2041
  %2198 = vst.msk [vmem:[%s5 + $0x120] sm:$0xff] %vm84, %v2043
  %2199 = vst.msk [vmem:[%s5 + $0x128] sm:$0xff] %vm84, %v2045
  %2200 = vst.msk [vmem:[%s5 + $0x130] sm:$0xff] %vm84, %v2047
  %2201 = vst.msk [vmem:[%s5 + $0x138] sm:$0xff] %vm84, %v2049
  %2202 = vst.msk [vmem:[%s5 + $0x140] sm:$0xff] %vm84, %v2051
  %2203 = vst.msk [vmem:[%s5 + $0x148] sm:$0xff] %vm84, %v2053
  %2204 = vst.msk [vmem:[%s5 + $0x150] sm:$0xff] %vm84, %v2055
  %2205 = vst.msk [vmem:[%s5 + $0x158] sm:$0xff] %vm84, %v2057
  %2206 = vst.msk [vmem:[%s5 + $0x160] sm:$0xff] %vm84, %v2059
  %2207 = vst.msk [vmem:[%s5 + $0x168] sm:$0xff] %vm84, %v2061
  %2208 = vst.msk [vmem:[%s5 + $0x170] sm:$0xff] %vm84, %v2063
  %2209 = vst.msk [vmem:[%s5 + $0x178] sm:$0xff] %vm84, %v2065
  %2210 = vst.msk [vmem:[%s5 + $0x180] sm:$0xff] %vm84, %v2067
  %2211 = vst.msk [vmem:[%s5 + $0x188] sm:$0xff] %vm84, %v2069
  %2212 = vst.msk [vmem:[%s5 + $0x190] sm:$0xff] %vm84, %v2071
  %2213 = vst.msk [vmem:[%s5 + $0x198] sm:$0xff] %vm84, %v2073
  %2214 = vst.msk [vmem:[%s5 + $0x1a0] sm:$0xff] %vm84, %v2075
  %2215 = vst.msk [vmem:[%s5 + $0x1a8] sm:$0xff] %vm84, %v2077
  %2216 = vst.msk [vmem:[%s5 + $0x1b0] sm:$0xff] %vm84, %v2079
  %2217 = vst.msk [vmem:[%s5 + $0x1b8] sm:$0xff] %vm84, %v2081
  %2218 = vst.msk [vmem:[%s5 + $0x1c0] sm:$0xff] %vm84, %v2083
  %2219 = vst.msk [vmem:[%s5 + $0x1c8] sm:$0xff] %vm84, %v2085
  %2220 = vst.msk [vmem:[%s5 + $0x1d0] sm:$0xff] %vm84, %v2087
  %2221 = vst.msk [vmem:[%s5 + $0x1d8] sm:$0xff] %vm84, %v2089
  %2222 = vst.msk [vmem:[%s5 + $0x1e0] sm:$0xff] %vm84, %v2091
  %2223 = vst.msk [vmem:[%s5 + $0x1e8] sm:$0xff] %vm84, %v2093
  %2224 = vst.msk [vmem:[%s5 + $0x1f0] sm:$0xff] %vm84, %v2095
  %2225 = vst.msk [vmem:[%s5 + $0x1f8] sm:$0xff] %vm84, %v2097
  // Predicated region
  $region18: #{tpu_custom_call.1} parent=0 // pred_check
    _
  $region19: #{tpu_custom_call.1} parent=0 // pred_check_branch
    %2227 = sbr.rel (0) target = $region21
  $region20: #{tpu_custom_call.1} parent=0 // pred_region
    _
  $region21: #{tpu_custom_call.1} parent=0 // pred_fallthru
    _
  // Predicated region
  $region22: #{tpu_custom_call.1} parent=0 // pred_check
    _
  $region23: #{tpu_custom_call.1} parent=0 // pred_check_branch
    %2229 = sbr.rel (0) target = $region25
  $region24: #{tpu_custom_call.1} parent=0 // pred_region
    _
  $region25: #{tpu_custom_call.1} parent=0 // pred_fallthru
    _
  // Predicated region
  $region26: #{tpu_custom_call.1} parent=0 // pred_check
    _
  $region27: #{tpu_custom_call.1} parent=0 // pred_check_branch
    %2231 = sbr.rel (0) target = $region29
  $region28: #{tpu_custom_call.1} parent=0 // pred_region
    _
  $region29: #{tpu_custom_call.1} parent=0 // pred_fallthru
    _
  // Predicated region
  $region30: #{tpu_custom_call.1} parent=0 // pred_check
    _
  $region31: #{tpu_custom_call.1} parent=0 // pred_check_branch
    %2233 = sbr.rel (0) target = $region33
  $region32: #{tpu_custom_call.1} parent=0 // pred_region
    _
  $region33: #{tpu_custom_call.1} parent=0 // pred_fallthru
    _

</llo_original>
